<compile_context>
chip_gen: v6e
topology: v6e:2x2x1
jax: 0.10.0
libtpu: 0.0.40
codegen_flags: <defaults>
</compile_context>

<pallas_src>
import jax
import jax.numpy as jnp
from jax import lax
from jax.experimental import pallas as pl
from jax.experimental.pallas import tpu as pltpu


def _lstm_kernel(ids_ref, len_ref, emb_aug_ref, w_big_ref, wout_ref, bout_ref,
                 out_ref, xp_ref):
    """Fused embedding + skewed 2-layer LSTM + head, single program.

    ids_ref     : ((T+1)*B, 1) i32   time-major token ids (+1 dummy step)
    len_ref     : (B, 1)       i32   sequence lengths (0 for padded rows)
    emb_aug_ref : (V, 8H)      f32   [emb@Wih0.T + b0 | b1] per gate, interleaved
    w_big_ref   : (2H, 8H)     bf16  block recurrent weights, interleaved gates
    wout_ref    : (H, 128)     f32   head weight in column 0
    bout_ref    : (1, 128)     f32   head bias in column 0
    out_ref     : (B, 128)     f32   sigmoid(head) in column 0 (lane-dense)
    xp_ref      : ((T+1)*B,8H) f32   scratch: per-step additive gate terms
    """
    B = len_ref.shape[0]
    V, H8 = emb_aug_ref.shape
    H = H8 // 8
    T = ids_ref.shape[0] // B - 1

    # ---- prologue: one-hot gather of the fused (projection + bias) table ----
    # xp[n*B + b] = emb_aug[token[n, b]]; layer-1 columns carry b1 automatically.
    ids = ids_ref[...]                                               # (N, 1)
    onehot = (ids == lax.broadcasted_iota(jnp.int32, (ids.shape[0], V), 1)
              ).astype(jnp.float32)
    xp_ref[...] = jnp.dot(onehot, emb_aug_ref[...],
                          preferred_element_type=jnp.float32)

    w_big = w_big_ref[...]                                           # (2H, 8H)
    lengths = len_ref[...]                                           # (B, 1)
    # 1s on layer-0 columns, 0s on layer-1 columns of the packed (B, 2H) state.
    l0_mask = (lax.broadcasted_iota(jnp.int32, (1, 2 * H), 1) < H
               ).astype(jnp.float32)

    def lstm_act(g, c_prev):
        # Packed gates (B, 8H) laid out [i0 i1 | f0 f1 | g0 g1 | o0 o1];
        # packed state (B, 2H) laid out [layer0 | layer1].
        sig = jax.nn.sigmoid(g)                                      # 2 EUP vregs
        tnh = jnp.tanh(g[:, 4 * H:])                                 # 1 EUP vreg
        c_new = sig[:, 2 * H:4 * H] * c_prev + sig[:, :2 * H] * tnh[:, :2 * H]
        h_new = sig[:, 6 * H:] * jnp.tanh(c_new)
        return h_new, c_new

    # ---- peeled iteration 0: layer-0 timestep 0 only.  State is all zero so
    # the recurrent matmul is skipped; layer-1 halves are forced back to zero.
    zeros2h = jnp.zeros((B, 2 * H), jnp.float32)
    h_pk, c_pk = lstm_act(xp_ref[pl.ds(0, B), :], zeros2h)
    h_pk = h_pk * l0_mask
    c_pk = c_pk * l0_mask

    # ---- skewed steady state: iteration n = layer-0 @ t=n, layer-1 @ t=n-1 --
    def step(n, carry):
        h_pk, c_pk, h1_fin = carry
        xp_n = xp_ref[pl.ds(n * B, B), :]                            # (B, 8H)
        g = xp_n + jnp.dot(h_pk.astype(jnp.bfloat16), w_big,
                           preferred_element_type=jnp.float32)
        h_pk, c_pk = lstm_act(g, c_pk)
        # Off-critical-path capture of the top-layer hidden state at t = len-1
        # (replaces all per-step masking of the recurrence).
        h1_fin = jnp.where(lengths == n, h_pk[:, H:], h1_fin)
        return h_pk, c_pk, h1_fin

    h1_init = jnp.zeros((B, H), jnp.float32)
    _, _, h1_fin = lax.fori_loop(1, T + 1, step, (h_pk, c_pk, h1_init),
                                 unroll=True)

    # ---- fused output head: Linear(H, 1) + Sigmoid, lane-dense store --------
    logits = jnp.dot(h1_fin, wout_ref[...],
                     preferred_element_type=jnp.float32) + bout_ref[...]
    out_ref[...] = jax.nn.sigmoid(logits)


def pack_weights(params):
    """One-time weight prep (input-independent): fold biases / fuse layouts."""
    H = params["whh0"].shape[1]
    V, _ = params["embedding"].shape
    emb = params["embedding"].astype(jnp.float32)
    b0 = params["bih0"] + params["bhh0"]
    b1 = params["bih1"] + params["bhh1"]

    aug_blocks, w_blocks = [], []
    for g in range(4):                      # torch gate order: i, f, g, o
        sl = slice(g * H, (g + 1) * H)
        # additive term: layer-0 cols = emb @ Wih0_g.T + b0_g ; layer-1 cols = b1_g
        p0 = emb @ params["wih0"][sl].T + b0[sl]                     # (V, H)
        p1 = jnp.broadcast_to(b1[sl], (V, H))                        # (V, H)
        aug_blocks.append(jnp.concatenate([p0, p1], axis=1))
        # recurrent block: rows [h0 ; h1]; layer-0 cols never see h1 (zero block)
        w_l0 = jnp.concatenate(
            [params["whh0"][sl].T, jnp.zeros((H, H), jnp.float32)], axis=0)
        w_l1 = jnp.concatenate(
            [params["wih1"][sl].T, params["whh1"][sl].T], axis=0)
        w_blocks.append(jnp.concatenate([w_l0, w_l1], axis=1))

    emb_aug = jnp.concatenate(aug_blocks, axis=1)                    # (V, 8H) f32
    w_big = jnp.concatenate(w_blocks, axis=1).astype(jnp.bfloat16)   # (2H, 8H)
    wout_pad = jnp.zeros((H, 128), jnp.float32).at[:, 0].set(params["wout"][0])
    bout_pad = jnp.zeros((1, 128), jnp.float32).at[0, 0].set(params["bout"][0])
    return {"emb_aug": emb_aug, "w_big": w_big,
            "wout_pad": wout_pad, "bout_pad": bout_pad}


@jax.jit
def lstm_forward(text, text_lengths, packed):
    """text: (B, T) int32 token ids; text_lengths: (B,) int32."""
    B, T = text.shape
    V, H8 = packed["emb_aug"].shape
    H = H8 // 8
    B_pad = ((B + 7) // 8) * 8                                       # sublane pad

    # Time-major ids with one dummy trailing step (epilogue of the skewed
    # pipeline); padded batch rows get token 0 and length 0 (never selected).
    ids_tm = jnp.zeros((T + 1, B_pad), jnp.int32).at[:T, :B].set(
        text.T.astype(jnp.int32))
    ids_col = ids_tm.reshape((T + 1) * B_pad, 1)
    lengths = jnp.zeros((B_pad, 1), jnp.int32).at[:B, 0].set(
        text_lengths.astype(jnp.int32))

    vmem = pl.BlockSpec(memory_space=pltpu.MemorySpace.VMEM)
    out = pl.pallas_call(
        _lstm_kernel,
        out_shape=jax.ShapeDtypeStruct((B_pad, 128), jnp.float32),
        in_specs=[vmem] * 6,
        out_specs=vmem,
        scratch_shapes=[pltpu.VMEM(((T + 1) * B_pad, H8), jnp.float32)],
    )(ids_col, lengths, packed["emb_aug"], packed["w_big"],
      packed["wout_pad"], packed["bout_pad"])

    return out[:B, 0:1]


def lstm_reference(text, text_lengths, params):
    """Pure-JAX f32 reference mirroring torch semantics."""
    B, T = text.shape
    H = params["whh0"].shape[1]
    x = jnp.take(params["embedding"], text, axis=0).astype(jnp.float32)

    def cell(x_t, h, c, wih, whh, b):
        g = x_t @ wih.T + h @ whh.T + b
        i = jax.nn.sigmoid(g[:, :H]); f = jax.nn.sigmoid(g[:, H:2 * H])
        gg = jnp.tanh(g[:, 2 * H:3 * H]); o = jax.nn.sigmoid(g[:, 3 * H:])
        c_n = f * c + i * gg
        return o * jnp.tanh(c_n), c_n

    h0 = c0 = h1 = c1 = jnp.zeros((B, H), jnp.float32)
    b0 = params["bih0"] + params["bhh0"]
    b1 = params["bih1"] + params["bhh1"]
    for t in range(T):
        m = (t < text_lengths).astype(jnp.float32)[:, None]
        hn, cn = cell(x[:, t], h0, c0, params["wih0"], params["whh0"], b0)
        h0 = m * hn + (1 - m) * h0
        c0 = m * cn + (1 - m) * c0
        hn1, cn1 = cell(h0, h1, c1, params["wih1"], params["whh1"], b1)
        h1 = m * hn1 + (1 - m) * h1
        c1 = m * cn1 + (1 - m) * c1
    return jax.nn.sigmoid(h1 @ params["wout"].T + params["bout"])


def init_params(key, num_embeddings, num_features, hidden_size):
    V, D, H = num_embeddings, num_features, hidden_size
    ks = jax.random.split(key, 12)
    s = 1.0 / jnp.sqrt(H)
    u = lambda k, shape: jax.random.uniform(k, shape, jnp.float32, -s, s)
    return {
        "embedding": jax.random.normal(ks[0], (V, D), jnp.float32),
        "wih0": u(ks[1], (4 * H, D)),  "whh0": u(ks[2], (4 * H, H)),
        "bih0": u(ks[3], (4 * H,)),    "bhh0": u(ks[4], (4 * H,)),
        "wih1": u(ks[5], (4 * H, H)),  "whh1": u(ks[6], (4 * H, H)),
        "bih1": u(ks[7], (4 * H,)),    "bhh1": u(ks[8], (4 * H,)),
        "wout": u(ks[9], (1, H)),      "bout": u(ks[10], (1,)),
    }


if __name__ == "__main__":
    B, T = 2, 8
    num_embeddings, num_features, hidden_size = 64, 16, 32

    key = jax.random.PRNGKey(0)
    k_params, k_text = jax.random.split(key)
    params = init_params(k_params, num_embeddings, num_features, hidden_size)

    text = jax.random.randint(k_text, (B, T), 0, num_embeddings, jnp.int32)
    text_lengths = jnp.array([8, 5], dtype=jnp.int32)  # sorted desc (pack_padded)

    packed = pack_weights(params)
    out = lstm_forward(text, text_lengths, packed)
    jax.block_until_ready(out)

    ref = lstm_reference(text, text_lengths, params)
    assert out.shape == (B, 1)
    # bf16 MXU operands on the recurrence -> relaxed tolerance (review note).
    assert jnp.allclose(out, ref, atol=1e-2, rtol=0.0)
    print("KERNEL_OK")
</pallas_src>

<mosaic_0001>
module attributes {stable_mosaic.version = 11 : i64} {
  func.func @_lstm_kernel(%arg0: memref<72x1xi32, #tpu.memory_space<vmem>>, %arg1: memref<8x1xi32, #tpu.memory_space<vmem>>, %arg2: memref<64x256xf32, #tpu.memory_space<vmem>>, %arg3: memref<64x256xbf16, #tpu.memory_space<vmem>>, %arg4: memref<32x128xf32, #tpu.memory_space<vmem>>, %arg5: memref<1x128xf32, #tpu.memory_space<vmem>>, %arg6: memref<8x128xf32, #tpu.memory_space<vmem>>, %arg7: memref<72x256xf32, #tpu.memory_space<vmem>>) attributes {dimension_semantics = [], scalar_prefetch = 0 : i64, scratch_operands = 1 : i64, tpu.core_type = #tpu.core_type<tc>} {
    %c0 = arith.constant 0 : index
    %c0_0 = arith.constant 0 : index
    %0 = vector.load %arg0[%c0, %c0_0] : memref<72x1xi32, #tpu.memory_space<vmem>>, vector<72x1xi32>
    %1 = tpu.iota {dimensions = array<i32: 1>} : vector<72x64xi32>
    %2 = vector.broadcast %0 : vector<72x1xi32> to vector<72x64xi32>
    %3 = arith.cmpi eq, %2, %1 : vector<72x64xi32>
    %4 = arith.extui %3 : vector<72x64xi1> to vector<72x64xi32>
    %5 = arith.sitofp %4 : vector<72x64xi32> to vector<72x64xf32>
    %c0_1 = arith.constant 0 : index
    %c0_2 = arith.constant 0 : index
    %6 = vector.load %arg2[%c0_1, %c0_2] : memref<64x256xf32, #tpu.memory_space<vmem>>, vector<64x256xf32>
    %cst = arith.constant dense<0.000000e+00> : vector<72x256xf32>
    %7 = tpu.matmul %5, %6, %cst {dimension_numbers = #tpu.dot_dimension_numbers<[1], [0], [0], [1], [0, 0, 1, 1], [], []>} : vector<72x64xf32>, vector<64x256xf32>, vector<72x256xf32> -> vector<72x256xf32>
    %c0_3 = arith.constant 0 : index
    %c0_4 = arith.constant 0 : index
    %8 = vector.load %arg7[%c0_3, %c0_4] : memref<72x256xf32, #tpu.memory_space<vmem>>, vector<72x256xf32>
    tpu.vector_store %arg7[%c0_3, %c0_4], %7 {strides = array<i32>} : memref<72x256xf32, #tpu.memory_space<vmem>>, vector<72x256xf32>,
    %c0_5 = arith.constant 0 : index
    %c0_6 = arith.constant 0 : index
    %9 = vector.load %arg3[%c0_5, %c0_6] : memref<64x256xbf16, #tpu.memory_space<vmem>>, vector<64x256xbf16>
    %c0_7 = arith.constant 0 : index
    %c0_8 = arith.constant 0 : index
    %10 = vector.load %arg1[%c0_7, %c0_8] : memref<8x1xi32, #tpu.memory_space<vmem>>, vector<8x1xi32>
    %11 = tpu.iota {dimensions = array<i32: 1>} : vector<1x64xi32>
    %c32_i32 = arith.constant 32 : i32
    %12 = vector.broadcast %c32_i32 : i32 to vector<1x64xi32>
    %13 = arith.cmpi slt, %11, %12 : vector<1x64xi32>
    %14 = arith.extui %13 : vector<1x64xi1> to vector<1x64xi32>
    %15 = arith.sitofp %14 : vector<1x64xi32> to vector<1x64xf32>
    %cst_9 = arith.constant 0.000000e+00 : f32
    %16 = vector.broadcast %cst_9 : f32 to vector<8x64xf32>
    %c0_10 = arith.constant 0 : index
    %c0_11 = arith.constant 0 : index
    %17 = vector.load %arg7[%c0_10, %c0_11] : memref<72x256xf32, #tpu.memory_space<vmem>>, vector<8x256xf32>
    %18 = arith.negf %17 : vector<8x256xf32>
    %19 = math.exp %18 : vector<8x256xf32>
    %cst_12 = arith.constant 1.000000e+00 : f32
    %20 = vector.broadcast %cst_12 : f32 to vector<8x256xf32>
    %21 = arith.addf %20, %19 : vector<8x256xf32>
    %22 = arith.divf %20, %21 : vector<8x256xf32>
    %23 = vector.extract_strided_slice %17 {offsets = [0, 128], sizes = [8, 128], strides = [1, 1]} : vector<8x256xf32> to vector<8x128xf32>
    %24 = math.tanh %23 : vector<8x128xf32>
    %25 = vector.extract_strided_slice %22 {offsets = [0, 64], sizes = [8, 64], strides = [1, 1]} : vector<8x256xf32> to vector<8x64xf32>
    %26 = arith.mulf %25, %16 : vector<8x64xf32>
    %27 = vector.extract_strided_slice %22 {offsets = [0, 0], sizes = [8, 64], strides = [1, 1]} : vector<8x256xf32> to vector<8x64xf32>
    %28 = vector.extract_strided_slice %24 {offsets = [0, 0], sizes = [8, 64], strides = [1, 1]} : vector<8x128xf32> to vector<8x64xf32>
    %29 = arith.mulf %27, %28 : vector<8x64xf32>
    %30 = arith.addf %26, %29 : vector<8x64xf32>
    %31 = vector.extract_strided_slice %22 {offsets = [0, 192], sizes = [8, 64], strides = [1, 1]} : vector<8x256xf32> to vector<8x64xf32>
    %32 = math.tanh %30 : vector<8x64xf32>
    %33 = arith.mulf %31, %32 : vector<8x64xf32>
    %34 = vector.broadcast %15 : vector<1x64xf32> to vector<8x64xf32>
    %35 = arith.mulf %33, %34 : vector<8x64xf32>
    %36 = vector.broadcast %15 : vector<1x64xf32> to vector<8x64xf32>
    %37 = arith.mulf %30, %36 : vector<8x64xf32>
    %cst_13 = arith.constant 0.000000e+00 : f32
    %38 = vector.broadcast %cst_13 : f32 to vector<8x32xf32>
    %c1_i32 = arith.constant 1 : i32
    %c8_i32 = arith.constant 8 : i32
    %39 = arith.muli %c1_i32, %c8_i32 : i32
    %40 = arith.index_cast %39 : i32 to index
    %c0_14 = arith.constant 0 : index
    %41 = vector.load %arg7[%40, %c0_14] : memref<72x256xf32, #tpu.memory_space<vmem>>, vector<8x256xf32>
    %42 = arith.truncf %35 : vector<8x64xf32> to vector<8x64xbf16>
    %cst_15 = arith.constant dense<0.000000e+00> : vector<8x256xf32>
    %43 = tpu.matmul %42, %9, %cst_15 {dimension_numbers = #tpu.dot_dimension_numbers<[1], [0], [0], [1], [0, 0, 1, 1], [], []>} : vector<8x64xbf16>, vector<64x256xbf16>, vector<8x256xf32> -> vector<8x256xf32>
    %44 = arith.addf %41, %43 : vector<8x256xf32>
    %45 = arith.negf %44 : vector<8x256xf32>
    %46 = math.exp %45 : vector<8x256xf32>
    %cst_16 = arith.constant 1.000000e+00 : f32
    %47 = vector.broadcast %cst_16 : f32 to vector<8x256xf32>
    %48 = arith.addf %47, %46 : vector<8x256xf32>
    %49 = arith.divf %47, %48 : vector<8x256xf32>
    %50 = vector.extract_strided_slice %44 {offsets = [0, 128], sizes = [8, 128], strides = [1, 1]} : vector<8x256xf32> to vector<8x128xf32>
    %51 = math.tanh %50 : vector<8x128xf32>
    %52 = vector.extract_strided_slice %49 {offsets = [0, 64], sizes = [8, 64], strides = [1, 1]} : vector<8x256xf32> to vector<8x64xf32>
    %53 = arith.mulf %52, %37 : vector<8x64xf32>
    %54 = vector.extract_strided_slice %49 {offsets = [0, 0], sizes = [8, 64], strides = [1, 1]} : vector<8x256xf32> to vector<8x64xf32>
    %55 = vector.extract_strided_slice %51 {offsets = [0, 0], sizes = [8, 64], strides = [1, 1]} : vector<8x128xf32> to vector<8x64xf32>
    %56 = arith.mulf %54, %55 : vector<8x64xf32>
    %57 = arith.addf %53, %56 : vector<8x64xf32>
    %58 = vector.extract_strided_slice %49 {offsets = [0, 192], sizes = [8, 64], strides = [1, 1]} : vector<8x256xf32> to vector<8x64xf32>
    %59 = math.tanh %57 : vector<8x64xf32>
    %60 = arith.mulf %58, %59 : vector<8x64xf32>
    %61 = vector.broadcast %c1_i32 : i32 to vector<8x1xi32>
    %62 = arith.cmpi eq, %10, %61 : vector<8x1xi32>
    %63 = vector.extract_strided_slice %60 {offsets = [0, 32], sizes = [8, 32], strides = [1, 1]} : vector<8x64xf32> to vector<8x32xf32>
    %64 = vector.shape_cast %62 : vector<8x1xi1> to vector<8x1xi1>
    %65 = vector.broadcast %64 : vector<8x1xi1> to vector<8x32xi1>
    %66 = arith.select %65, %63, %38 : vector<8x32xi1>, vector<8x32xf32>
    %c2_i32 = arith.constant 2 : i32
    %c8_i32_17 = arith.constant 8 : i32
    %67 = arith.muli %c2_i32, %c8_i32_17 : i32
    %68 = arith.index_cast %67 : i32 to index
    %c0_18 = arith.constant 0 : index
    %69 = vector.load %arg7[%68, %c0_18] : memref<72x256xf32, #tpu.memory_space<vmem>>, vector<8x256xf32>
    %70 = arith.truncf %60 : vector<8x64xf32> to vector<8x64xbf16>
    %cst_19 = arith.constant dense<0.000000e+00> : vector<8x256xf32>
    %71 = tpu.matmul %70, %9, %cst_19 {dimension_numbers = #tpu.dot_dimension_numbers<[1], [0], [0], [1], [0, 0, 1, 1], [], []>} : vector<8x64xbf16>, vector<64x256xbf16>, vector<8x256xf32> -> vector<8x256xf32>
    %72 = arith.addf %69, %71 : vector<8x256xf32>
    %73 = arith.negf %72 : vector<8x256xf32>
    %74 = math.exp %73 : vector<8x256xf32>
    %cst_20 = arith.constant 1.000000e+00 : f32
    %75 = vector.broadcast %cst_20 : f32 to vector<8x256xf32>
    %76 = arith.addf %75, %74 : vector<8x256xf32>
    %77 = arith.divf %75, %76 : vector<8x256xf32>
    %78 = vector.extract_strided_slice %72 {offsets = [0, 128], sizes = [8, 128], strides = [1, 1]} : vector<8x256xf32> to vector<8x128xf32>
    %79 = math.tanh %78 : vector<8x128xf32>
    %80 = vector.extract_strided_slice %77 {offsets = [0, 64], sizes = [8, 64], strides = [1, 1]} : vector<8x256xf32> to vector<8x64xf32>
    %81 = arith.mulf %80, %57 : vector<8x64xf32>
    %82 = vector.extract_strided_slice %77 {offsets = [0, 0], sizes = [8, 64], strides = [1, 1]} : vector<8x256xf32> to vector<8x64xf32>
    %83 = vector.extract_strided_slice %79 {offsets = [0, 0], sizes = [8, 64], strides = [1, 1]} : vector<8x128xf32> to vector<8x64xf32>
    %84 = arith.mulf %82, %83 : vector<8x64xf32>
    %85 = arith.addf %81, %84 : vector<8x64xf32>
    %86 = vector.extract_strided_slice %77 {offsets = [0, 192], sizes = [8, 64], strides = [1, 1]} : vector<8x256xf32> to vector<8x64xf32>
    %87 = math.tanh %85 : vector<8x64xf32>
    %88 = arith.mulf %86, %87 : vector<8x64xf32>
    %89 = vector.broadcast %c2_i32 : i32 to vector<8x1xi32>
    %90 = arith.cmpi eq, %10, %89 : vector<8x1xi32>
    %91 = vector.extract_strided_slice %88 {offsets = [0, 32], sizes = [8, 32], strides = [1, 1]} : vector<8x64xf32> to vector<8x32xf32>
    %92 = vector.shape_cast %90 : vector<8x1xi1> to vector<8x1xi1>
    %93 = vector.broadcast %92 : vector<8x1xi1> to vector<8x32xi1>
    %94 = arith.select %93, %91, %66 : vector<8x32xi1>, vector<8x32xf32>
    %c3_i32 = arith.constant 3 : i32
    %c8_i32_21 = arith.constant 8 : i32
    %95 = arith.muli %c3_i32, %c8_i32_21 : i32
    %96 = arith.index_cast %95 : i32 to index
    %c0_22 = arith.constant 0 : index
    %97 = vector.load %arg7[%96, %c0_22] : memref<72x256xf32, #tpu.memory_space<vmem>>, vector<8x256xf32>
    %98 = arith.truncf %88 : vector<8x64xf32> to vector<8x64xbf16>
    %cst_23 = arith.constant dense<0.000000e+00> : vector<8x256xf32>
    %99 = tpu.matmul %98, %9, %cst_23 {dimension_numbers = #tpu.dot_dimension_numbers<[1], [0], [0], [1], [0, 0, 1, 1], [], []>} : vector<8x64xbf16>, vector<64x256xbf16>, vector<8x256xf32> -> vector<8x256xf32>
    %100 = arith.addf %97, %99 : vector<8x256xf32>
    %101 = arith.negf %100 : vector<8x256xf32>
    %102 = math.exp %101 : vector<8x256xf32>
    %cst_24 = arith.constant 1.000000e+00 : f32
    %103 = vector.broadcast %cst_24 : f32 to vector<8x256xf32>
    %104 = arith.addf %103, %102 : vector<8x256xf32>
    %105 = arith.divf %103, %104 : vector<8x256xf32>
    %106 = vector.extract_strided_slice %100 {offsets = [0, 128], sizes = [8, 128], strides = [1, 1]} : vector<8x256xf32> to vector<8x128xf32>
    %107 = math.tanh %106 : vector<8x128xf32>
    %108 = vector.extract_strided_slice %105 {offsets = [0, 64], sizes = [8, 64], strides = [1, 1]} : vector<8x256xf32> to vector<8x64xf32>
    %109 = arith.mulf %108, %85 : vector<8x64xf32>
    %110 = vector.extract_strided_slice %105 {offsets = [0, 0], sizes = [8, 64], strides = [1, 1]} : vector<8x256xf32> to vector<8x64xf32>
    %111 = vector.extract_strided_slice %107 {offsets = [0, 0], sizes = [8, 64], strides = [1, 1]} : vector<8x128xf32> to vector<8x64xf32>
    %112 = arith.mulf %110, %111 : vector<8x64xf32>
    %113 = arith.addf %109, %112 : vector<8x64xf32>
    %114 = vector.extract_strided_slice %105 {offsets = [0, 192], sizes = [8, 64], strides = [1, 1]} : vector<8x256xf32> to vector<8x64xf32>
    %115 = math.tanh %113 : vector<8x64xf32>
    %116 = arith.mulf %114, %115 : vector<8x64xf32>
    %117 = vector.broadcast %c3_i32 : i32 to vector<8x1xi32>
    %118 = arith.cmpi eq, %10, %117 : vector<8x1xi32>
    %119 = vector.extract_strided_slice %116 {offsets = [0, 32], sizes = [8, 32], strides = [1, 1]} : vector<8x64xf32> to vector<8x32xf32>
    %120 = vector.shape_cast %118 : vector<8x1xi1> to vector<8x1xi1>
    %121 = vector.broadcast %120 : vector<8x1xi1> to vector<8x32xi1>
    %122 = arith.select %121, %119, %94 : vector<8x32xi1>, vector<8x32xf32>
    %c4_i32 = arith.constant 4 : i32
    %c8_i32_25 = arith.constant 8 : i32
    %123 = arith.muli %c4_i32, %c8_i32_25 : i32
    %124 = arith.index_cast %123 : i32 to index
    %c0_26 = arith.constant 0 : index
    %125 = vector.load %arg7[%124, %c0_26] : memref<72x256xf32, #tpu.memory_space<vmem>>, vector<8x256xf32>
    %126 = arith.truncf %116 : vector<8x64xf32> to vector<8x64xbf16>
    %cst_27 = arith.constant dense<0.000000e+00> : vector<8x256xf32>
    %127 = tpu.matmul %126, %9, %cst_27 {dimension_numbers = #tpu.dot_dimension_numbers<[1], [0], [0], [1], [0, 0, 1, 1], [], []>} : vector<8x64xbf16>, vector<64x256xbf16>, vector<8x256xf32> -> vector<8x256xf32>
    %128 = arith.addf %125, %127 : vector<8x256xf32>
    %129 = arith.negf %128 : vector<8x256xf32>
    %130 = math.exp %129 : vector<8x256xf32>
    %cst_28 = arith.constant 1.000000e+00 : f32
    %131 = vector.broadcast %cst_28 : f32 to vector<8x256xf32>
    %132 = arith.addf %131, %130 : vector<8x256xf32>
    %133 = arith.divf %131, %132 : vector<8x256xf32>
    %134 = vector.extract_strided_slice %128 {offsets = [0, 128], sizes = [8, 128], strides = [1, 1]} : vector<8x256xf32> to vector<8x128xf32>
    %135 = math.tanh %134 : vector<8x128xf32>
    %136 = vector.extract_strided_slice %133 {offsets = [0, 64], sizes = [8, 64], strides = [1, 1]} : vector<8x256xf32> to vector<8x64xf32>
    %137 = arith.mulf %136, %113 : vector<8x64xf32>
    %138 = vector.extract_strided_slice %133 {offsets = [0, 0], sizes = [8, 64], strides = [1, 1]} : vector<8x256xf32> to vector<8x64xf32>
    %139 = vector.extract_strided_slice %135 {offsets = [0, 0], sizes = [8, 64], strides = [1, 1]} : vector<8x128xf32> to vector<8x64xf32>
    %140 = arith.mulf %138, %139 : vector<8x64xf32>
    %141 = arith.addf %137, %140 : vector<8x64xf32>
    %142 = vector.extract_strided_slice %133 {offsets = [0, 192], sizes = [8, 64], strides = [1, 1]} : vector<8x256xf32> to vector<8x64xf32>
    %143 = math.tanh %141 : vector<8x64xf32>
    %144 = arith.mulf %142, %143 : vector<8x64xf32>
    %145 = vector.broadcast %c4_i32 : i32 to vector<8x1xi32>
    %146 = arith.cmpi eq, %10, %145 : vector<8x1xi32>
    %147 = vector.extract_strided_slice %144 {offsets = [0, 32], sizes = [8, 32], strides = [1, 1]} : vector<8x64xf32> to vector<8x32xf32>
    %148 = vector.shape_cast %146 : vector<8x1xi1> to vector<8x1xi1>
    %149 = vector.broadcast %148 : vector<8x1xi1> to vector<8x32xi1>
    %150 = arith.select %149, %147, %122 : vector<8x32xi1>, vector<8x32xf32>
    %c5_i32 = arith.constant 5 : i32
    %c8_i32_29 = arith.constant 8 : i32
    %151 = arith.muli %c5_i32, %c8_i32_29 : i32
    %152 = arith.index_cast %151 : i32 to index
    %c0_30 = arith.constant 0 : index
    %153 = vector.load %arg7[%152, %c0_30] : memref<72x256xf32, #tpu.memory_space<vmem>>, vector<8x256xf32>
    %154 = arith.truncf %144 : vector<8x64xf32> to vector<8x64xbf16>
    %cst_31 = arith.constant dense<0.000000e+00> : vector<8x256xf32>
    %155 = tpu.matmul %154, %9, %cst_31 {dimension_numbers = #tpu.dot_dimension_numbers<[1], [0], [0], [1], [0, 0, 1, 1], [], []>} : vector<8x64xbf16>, vector<64x256xbf16>, vector<8x256xf32> -> vector<8x256xf32>
    %156 = arith.addf %153, %155 : vector<8x256xf32>
    %157 = arith.negf %156 : vector<8x256xf32>
    %158 = math.exp %157 : vector<8x256xf32>
    %cst_32 = arith.constant 1.000000e+00 : f32
    %159 = vector.broadcast %cst_32 : f32 to vector<8x256xf32>
    %160 = arith.addf %159, %158 : vector<8x256xf32>
    %161 = arith.divf %159, %160 : vector<8x256xf32>
    %162 = vector.extract_strided_slice %156 {offsets = [0, 128], sizes = [8, 128], strides = [1, 1]} : vector<8x256xf32> to vector<8x128xf32>
    %163 = math.tanh %162 : vector<8x128xf32>
    %164 = vector.extract_strided_slice %161 {offsets = [0, 64], sizes = [8, 64], strides = [1, 1]} : vector<8x256xf32> to vector<8x64xf32>
    %165 = arith.mulf %164, %141 : vector<8x64xf32>
    %166 = vector.extract_strided_slice %161 {offsets = [0, 0], sizes = [8, 64], strides = [1, 1]} : vector<8x256xf32> to vector<8x64xf32>
    %167 = vector.extract_strided_slice %163 {offsets = [0, 0], sizes = [8, 64], strides = [1, 1]} : vector<8x128xf32> to vector<8x64xf32>
    %168 = arith.mulf %166, %167 : vector<8x64xf32>
    %169 = arith.addf %165, %168 : vector<8x64xf32>
    %170 = vector.extract_strided_slice %161 {offsets = [0, 192], sizes = [8, 64], strides = [1, 1]} : vector<8x256xf32> to vector<8x64xf32>
    %171 = math.tanh %169 : vector<8x64xf32>
    %172 = arith.mulf %170, %171 : vector<8x64xf32>
    %173 = vector.broadcast %c5_i32 : i32 to vector<8x1xi32>
    %174 = arith.cmpi eq, %10, %173 : vector<8x1xi32>
    %175 = vector.extract_strided_slice %172 {offsets = [0, 32], sizes = [8, 32], strides = [1, 1]} : vector<8x64xf32> to vector<8x32xf32>
    %176 = vector.shape_cast %174 : vector<8x1xi1> to vector<8x1xi1>
    %177 = vector.broadcast %176 : vector<8x1xi1> to vector<8x32xi1>
    %178 = arith.select %177, %175, %150 : vector<8x32xi1>, vector<8x32xf32>
    %c6_i32 = arith.constant 6 : i32
    %c8_i32_33 = arith.constant 8 : i32
    %179 = arith.muli %c6_i32, %c8_i32_33 : i32
    %180 = arith.index_cast %179 : i32 to index
    %c0_34 = arith.constant 0 : index
    %181 = vector.load %arg7[%180, %c0_34] : memref<72x256xf32, #tpu.memory_space<vmem>>, vector<8x256xf32>
    %182 = arith.truncf %172 : vector<8x64xf32> to vector<8x64xbf16>
    %cst_35 = arith.constant dense<0.000000e+00> : vector<8x256xf32>
    %183 = tpu.matmul %182, %9, %cst_35 {dimension_numbers = #tpu.dot_dimension_numbers<[1], [0], [0], [1], [0, 0, 1, 1], [], []>} : vector<8x64xbf16>, vector<64x256xbf16>, vector<8x256xf32> -> vector<8x256xf32>
    %184 = arith.addf %181, %183 : vector<8x256xf32>
    %185 = arith.negf %184 : vector<8x256xf32>
    %186 = math.exp %185 : vector<8x256xf32>
    %cst_36 = arith.constant 1.000000e+00 : f32
    %187 = vector.broadcast %cst_36 : f32 to vector<8x256xf32>
    %188 = arith.addf %187, %186 : vector<8x256xf32>
    %189 = arith.divf %187, %188 : vector<8x256xf32>
    %190 = vector.extract_strided_slice %184 {offsets = [0, 128], sizes = [8, 128], strides = [1, 1]} : vector<8x256xf32> to vector<8x128xf32>
    %191 = math.tanh %190 : vector<8x128xf32>
    %192 = vector.extract_strided_slice %189 {offsets = [0, 64], sizes = [8, 64], strides = [1, 1]} : vector<8x256xf32> to vector<8x64xf32>
    %193 = arith.mulf %192, %169 : vector<8x64xf32>
    %194 = vector.extract_strided_slice %189 {offsets = [0, 0], sizes = [8, 64], strides = [1, 1]} : vector<8x256xf32> to vector<8x64xf32>
    %195 = vector.extract_strided_slice %191 {offsets = [0, 0], sizes = [8, 64], strides = [1, 1]} : vector<8x128xf32> to vector<8x64xf32>
    %196 = arith.mulf %194, %195 : vector<8x64xf32>
    %197 = arith.addf %193, %196 : vector<8x64xf32>
    %198 = vector.extract_strided_slice %189 {offsets = [0, 192], sizes = [8, 64], strides = [1, 1]} : vector<8x256xf32> to vector<8x64xf32>
    %199 = math.tanh %197 : vector<8x64xf32>
    %200 = arith.mulf %198, %199 : vector<8x64xf32>
    %201 = vector.broadcast %c6_i32 : i32 to vector<8x1xi32>
    %202 = arith.cmpi eq, %10, %201 : vector<8x1xi32>
    %203 = vector.extract_strided_slice %200 {offsets = [0, 32], sizes = [8, 32], strides = [1, 1]} : vector<8x64xf32> to vector<8x32xf32>
    %204 = vector.shape_cast %202 : vector<8x1xi1> to vector<8x1xi1>
    %205 = vector.broadcast %204 : vector<8x1xi1> to vector<8x32xi1>
    %206 = arith.select %205, %203, %178 : vector<8x32xi1>, vector<8x32xf32>
    %c7_i32 = arith.constant 7 : i32
    %c8_i32_37 = arith.constant 8 : i32
    %207 = arith.muli %c7_i32, %c8_i32_37 : i32
    %208 = arith.index_cast %207 : i32 to index
    %c0_38 = arith.constant 0 : index
    %209 = vector.load %arg7[%208, %c0_38] : memref<72x256xf32, #tpu.memory_space<vmem>>, vector<8x256xf32>
    %210 = arith.truncf %200 : vector<8x64xf32> to vector<8x64xbf16>
    %cst_39 = arith.constant dense<0.000000e+00> : vector<8x256xf32>
    %211 = tpu.matmul %210, %9, %cst_39 {dimension_numbers = #tpu.dot_dimension_numbers<[1], [0], [0], [1], [0, 0, 1, 1], [], []>} : vector<8x64xbf16>, vector<64x256xbf16>, vector<8x256xf32> -> vector<8x256xf32>
    %212 = arith.addf %209, %211 : vector<8x256xf32>
    %213 = arith.negf %212 : vector<8x256xf32>
    %214 = math.exp %213 : vector<8x256xf32>
    %cst_40 = arith.constant 1.000000e+00 : f32
    %215 = vector.broadcast %cst_40 : f32 to vector<8x256xf32>
    %216 = arith.addf %215, %214 : vector<8x256xf32>
    %217 = arith.divf %215, %216 : vector<8x256xf32>
    %218 = vector.extract_strided_slice %212 {offsets = [0, 128], sizes = [8, 128], strides = [1, 1]} : vector<8x256xf32> to vector<8x128xf32>
    %219 = math.tanh %218 : vector<8x128xf32>
    %220 = vector.extract_strided_slice %217 {offsets = [0, 64], sizes = [8, 64], strides = [1, 1]} : vector<8x256xf32> to vector<8x64xf32>
    %221 = arith.mulf %220, %197 : vector<8x64xf32>
    %222 = vector.extract_strided_slice %217 {offsets = [0, 0], sizes = [8, 64], strides = [1, 1]} : vector<8x256xf32> to vector<8x64xf32>
    %223 = vector.extract_strided_slice %219 {offsets = [0, 0], sizes = [8, 64], strides = [1, 1]} : vector<8x128xf32> to vector<8x64xf32>
    %224 = arith.mulf %222, %223 : vector<8x64xf32>
    %225 = arith.addf %221, %224 : vector<8x64xf32>
    %226 = vector.extract_strided_slice %217 {offsets = [0, 192], sizes = [8, 64], strides = [1, 1]} : vector<8x256xf32> to vector<8x64xf32>
    %227 = math.tanh %225 : vector<8x64xf32>
    %228 = arith.mulf %226, %227 : vector<8x64xf32>
    %229 = vector.broadcast %c7_i32 : i32 to vector<8x1xi32>
    %230 = arith.cmpi eq, %10, %229 : vector<8x1xi32>
    %231 = vector.extract_strided_slice %228 {offsets = [0, 32], sizes = [8, 32], strides = [1, 1]} : vector<8x64xf32> to vector<8x32xf32>
    %232 = vector.shape_cast %230 : vector<8x1xi1> to vector<8x1xi1>
    %233 = vector.broadcast %232 : vector<8x1xi1> to vector<8x32xi1>
    %234 = arith.select %233, %231, %206 : vector<8x32xi1>, vector<8x32xf32>
    %c8_i32_41 = arith.constant 8 : i32
    %c8_i32_42 = arith.constant 8 : i32
    %235 = arith.muli %c8_i32_41, %c8_i32_42 : i32
    %236 = arith.index_cast %235 : i32 to index
    %c0_43 = arith.constant 0 : index
    %237 = vector.load %arg7[%236, %c0_43] : memref<72x256xf32, #tpu.memory_space<vmem>>, vector<8x256xf32>
    %238 = arith.truncf %228 : vector<8x64xf32> to vector<8x64xbf16>
    %cst_44 = arith.constant dense<0.000000e+00> : vector<8x256xf32>
    %239 = tpu.matmul %238, %9, %cst_44 {dimension_numbers = #tpu.dot_dimension_numbers<[1], [0], [0], [1], [0, 0, 1, 1], [], []>} : vector<8x64xbf16>, vector<64x256xbf16>, vector<8x256xf32> -> vector<8x256xf32>
    %240 = arith.addf %237, %239 : vector<8x256xf32>
    %241 = arith.negf %240 : vector<8x256xf32>
    %242 = math.exp %241 : vector<8x256xf32>
    %cst_45 = arith.constant 1.000000e+00 : f32
    %243 = vector.broadcast %cst_45 : f32 to vector<8x256xf32>
    %244 = arith.addf %243, %242 : vector<8x256xf32>
    %245 = arith.divf %243, %244 : vector<8x256xf32>
    %246 = vector.extract_strided_slice %240 {offsets = [0, 128], sizes = [8, 128], strides = [1, 1]} : vector<8x256xf32> to vector<8x128xf32>
    %247 = math.tanh %246 : vector<8x128xf32>
    %248 = vector.extract_strided_slice %245 {offsets = [0, 64], sizes = [8, 64], strides = [1, 1]} : vector<8x256xf32> to vector<8x64xf32>
    %249 = arith.mulf %248, %225 : vector<8x64xf32>
    %250 = vector.extract_strided_slice %245 {offsets = [0, 0], sizes = [8, 64], strides = [1, 1]} : vector<8x256xf32> to vector<8x64xf32>
    %251 = vector.extract_strided_slice %247 {offsets = [0, 0], sizes = [8, 64], strides = [1, 1]} : vector<8x128xf32> to vector<8x64xf32>
    %252 = arith.mulf %250, %251 : vector<8x64xf32>
    %253 = arith.addf %249, %252 : vector<8x64xf32>
    %254 = vector.extract_strided_slice %245 {offsets = [0, 192], sizes = [8, 64], strides = [1, 1]} : vector<8x256xf32> to vector<8x64xf32>
    %255 = math.tanh %253 : vector<8x64xf32>
    %256 = arith.mulf %254, %255 : vector<8x64xf32>
    %257 = vector.broadcast %c8_i32_41 : i32 to vector<8x1xi32>
    %258 = arith.cmpi eq, %10, %257 : vector<8x1xi32>
    %259 = vector.extract_strided_slice %256 {offsets = [0, 32], sizes = [8, 32], strides = [1, 1]} : vector<8x64xf32> to vector<8x32xf32>
    %260 = vector.shape_cast %258 : vector<8x1xi1> to vector<8x1xi1>
    %261 = vector.broadcast %260 : vector<8x1xi1> to vector<8x32xi1>
    %262 = arith.select %261, %259, %234 : vector<8x32xi1>, vector<8x32xf32>
    %c8_i32_46 = arith.constant 8 : i32
    %c0_47 = arith.constant 0 : index
    %c0_48 = arith.constant 0 : index
    %263 = vector.load %arg4[%c0_47, %c0_48] : memref<32x128xf32, #tpu.memory_space<vmem>>, vector<32x128xf32>
    %cst_49 = arith.constant dense<0.000000e+00> : vector<8x128xf32>
    %264 = tpu.matmul %262, %263, %cst_49 {dimension_numbers = #tpu.dot_dimension_numbers<[1], [0], [0], [1], [0, 0, 1, 1], [], []>} : vector<8x32xf32>, vector<32x128xf32>, vector<8x128xf32> -> vector<8x128xf32>
    %c0_50 = arith.constant 0 : index
    %c0_51 = arith.constant 0 : index
    %265 = vector.load %arg5[%c0_50, %c0_51] : memref<1x128xf32, #tpu.memory_space<vmem>>, vector<1x128xf32>
    %266 = vector.broadcast %265 : vector<1x128xf32> to vector<8x128xf32>
    %267 = arith.addf %264, %266 : vector<8x128xf32>
    %268 = arith.negf %267 : vector<8x128xf32>
    %269 = math.exp %268 : vector<8x128xf32>
    %cst_52 = arith.constant 1.000000e+00 : f32
    %270 = vector.broadcast %cst_52 : f32 to vector<8x128xf32>
    %271 = arith.addf %270, %269 : vector<8x128xf32>
    %272 = arith.divf %270, %271 : vector<8x128xf32>
    %c0_53 = arith.constant 0 : index
    %c0_54 = arith.constant 0 : index
    %273 = vector.load %arg6[%c0_53, %c0_54] : memref<8x128xf32, #tpu.memory_space<vmem>>, vector<8x128xf32>
    tpu.vector_store %arg6[%c0_53, %c0_54], %272 {strides = array<i32>} : memref<8x128xf32, #tpu.memory_space<vmem>>, vector<8x128xf32>,
    return
  }
}

</mosaic_0001>

<llo_original>
// kernel: lstm_forward.1
$region0: #{lstm_forward.1}
  #allocation0 [shape = 'u32[]', space=smem, size = 0x4, offset = 0x4, fixed_abs, tag = 'smem constant byte address 0x4 - core index']
  #allocation1 [shape = 'u32[144,128]{1,0:T(1,128)}', space=vmem, size = 0x12000, scoped, tag = 'internal scratch']
  #allocation2 [shape = 'f32[72,256]{1,0:T(8,128)}', space=vmem, size = 0x12000, scoped, tag = 'scratch operand']
  %s0 = inlined_call_operand.vmem [shape: s32[72,1], index: 0, kind: input, shape index: {}]
  %s1 = inlined_call_operand.vmem [shape: s32[8,1], index: 1, kind: input, shape index: {}]
  %s2 = inlined_call_operand.vmem [shape: f32[64,256], index: 2, kind: input, shape index: {}]
  %s3 = inlined_call_operand.hbm [shape: bf16[64,256], index: 3, kind: input, shape index: {}]
  %s4 = inlined_call_operand.hbm [shape: f32[32,128], index: 4, kind: input, shape index: {}]
  %s5 = inlined_call_operand.vmem [shape: f32[1,128], index: 5, kind: input, shape index: {}]
  %s6 = inlined_call_operand.vmem [shape: f32[8,128], index: 6, kind: output, shape index: {}]
  %s7 = sld [smem:[#allocation0]]
  $region42: #{lstm_forward.1} parent=0
    _
  %s9 = ssub.s32 1, %s7
  %s10 = scalar_select 0, %s9, %s7
  $region1: #{lstm_forward.1} parent=0
    #allocation3 [shape = 'u8[32768]{0}', space=vmem, size = 0x8000, scoped, tag = 'input window, operand 3, single buffered']
    #allocation4 [shape = 's32[1]{0}', space=sflag, size = 0x4, scoped, tag = 'scoped memory for lstm_forward.1']
    #allocation5 [shape = 'u8[16384]{0}', space=vmem, size = 0x4000, scoped, tag = 'input window, operand 4, single buffered']
    #allocation6 [shape = 's32[1]{0}', space=sflag, size = 0x4, scoped, tag = 'scoped memory for lstm_forward.1']
    %11 = vsyncpa [#allocation4], 0
    %12 = vsyncpa [#allocation6], 0
    // Predicated region
    $region2: #{lstm_forward.1} parent=1 // pred_check
      _
    $region3: #{lstm_forward.1} parent=1 // pred_check_branch
      %14 = sbr.rel (0) target = $region5
    $region4: #{lstm_forward.1} parent=1 // pred_region
      _
    $region5: #{lstm_forward.1} parent=1 // pred_fallthru
      _
    // Predicated region
    $region6: #{lstm_forward.1} parent=1 // pred_check
      _
    $region7: #{lstm_forward.1} parent=1 // pred_check_branch
      %16 = sbr.rel (0) target = $region9
    $region8: #{lstm_forward.1} parent=1 // pred_region
      _
    $region9: #{lstm_forward.1} parent=1 // pred_fallthru
      _
    // Predicated region
    $region10: #{lstm_forward.1} parent=1 // pred_check
      _
    $region11: #{lstm_forward.1} parent=1 // pred_check_branch
      %18 = sbr.rel (0) target = $region13
    $region12: #{lstm_forward.1} parent=1 // pred_region
      _
    $region13: #{lstm_forward.1} parent=1 // pred_fallthru
      _
    // Predicated region
    $region14: #{lstm_forward.1} parent=1 // pred_check
      _
    $region15: #{lstm_forward.1} parent=1 // pred_check_branch
      %20 = sbr.rel (0) target = $region17
    $region16: #{lstm_forward.1} parent=1 // pred_region
      %s22 = ssub.s32 1024, 1024
      %23 = vsyncadd [#allocation4], %s22
      %s24 = sshll.u32 [#allocation3], 4
      %s25 = int_to_ptr.vmem [resolvable:$true] %s24
      %30 = dma.hbm_to_vmem [thread:$0]  %s3, 1024, %s25, [#allocation4], 128, 128, 8
    $region17: #{lstm_forward.1} parent=1 // pred_fallthru
      _
    // Predicated region
    $region18: #{lstm_forward.1} parent=1 // pred_check
      _
    $region19: #{lstm_forward.1} parent=1 // pred_check_branch
      %32 = sbr.rel (0) target = $region21
    $region20: #{lstm_forward.1} parent=1 // pred_region
      %s34 = ssub.s32 512, 512
      %35 = vsyncadd [#allocation6], %s34
      %s36 = sshll.u32 [#allocation5], 4
      %s37 = int_to_ptr.vmem [resolvable:$true] %s36
      %42 = dma.hbm_to_vmem [thread:$0]  %s4, 512, %s37, [#allocation6], 128, 128, 8
    $region21: #{lstm_forward.1} parent=1 // pred_fallthru
      _
    // Predicated region
    $region22: #{lstm_forward.1} parent=1 // pred_check
      _
    $region23: #{lstm_forward.1} parent=1 // pred_check_branch
      %44 = sbr.rel (0) target = $region25
    $region24: #{lstm_forward.1} parent=1 // pred_region
      _
    $region25: #{lstm_forward.1} parent=1 // pred_fallthru
      _
    // Predicated region
    $region26: #{lstm_forward.1} parent=1 // pred_check
      _
    $region27: #{lstm_forward.1} parent=1 // pred_check_branch
      %46 = sbr.rel (0) target = $region29
    $region28: #{lstm_forward.1} parent=1 // pred_region
      %47 = dma.done [#allocation4], 1024
    $region29: #{lstm_forward.1} parent=1 // pred_fallthru
      _
    // Predicated region
    $region30: #{lstm_forward.1} parent=1 // pred_check
      _
    $region31: #{lstm_forward.1} parent=1 // pred_check_branch
      %49 = sbr.rel (0) target = $region33
    $region32: #{lstm_forward.1} parent=1 // pred_region
      %50 = dma.done [#allocation6], 512
    $region33: #{lstm_forward.1} parent=1 // pred_fallthru
      _
    %v52 = vld [vmem:[%s0] sm:$0xff]
    %v53 = vld [vmem:[%s0 + $0x8] sm:$0xff]
    %v54 = vld [vmem:[%s0 + $0x10] sm:$0xff]
    %v55 = vld [vmem:[%s0 + $0x18] sm:$0xff]
    %v56 = vld [vmem:[%s0 + $0x20] sm:$0xff]
    %v57 = vld [vmem:[%s0 + $0x28] sm:$0xff]
    %v58 = vld [vmem:[%s0 + $0x30] sm:$0xff]
    %v59 = vld [vmem:[%s0 + $0x38] sm:$0xff]
    %v60 = vld [vmem:[%s0 + $0x40] sm:$0xff]
    %v61 = vlaneseq
    %v62 = vand.u32 %v61, 127
    %63 = vset.pattern.permute.xlu0 0
    %64 = vperm.xlu0 %63, %v52
    %v65 = vpop.permute.xlu0 %64
    %66 = vset.pattern.permute.xlu0 0
    %67 = vperm.xlu0 %66, %v53
    %v68 = vpop.permute.xlu0 %67
    %69 = vset.pattern.permute.xlu0 0
    %70 = vperm.xlu0 %69, %v54
    %v71 = vpop.permute.xlu0 %70
    %72 = vset.pattern.permute.xlu0 0
    %73 = vperm.xlu0 %72, %v55
    %v74 = vpop.permute.xlu0 %73
    %75 = vset.pattern.permute.xlu0 0
    %76 = vperm.xlu0 %75, %v56
    %v77 = vpop.permute.xlu0 %76
    %78 = vset.pattern.permute.xlu0 0
    %79 = vperm.xlu0 %78, %v57
    %v80 = vpop.permute.xlu0 %79
    %81 = vset.pattern.permute.xlu0 0
    %82 = vperm.xlu0 %81, %v58
    %v83 = vpop.permute.xlu0 %82
    %84 = vset.pattern.permute.xlu0 0
    %85 = vperm.xlu0 %84, %v59
    %v86 = vpop.permute.xlu0 %85
    %87 = vset.pattern.permute.xlu0 0
    %88 = vperm.xlu0 %87, %v60
    %v89 = vpop.permute.xlu0 %88
    %vm90 = vcmp.eq.s32.totalorder %v65, %v62
    %vm91 = vcmp.eq.s32.totalorder %v68, %v62
    %vm92 = vcmp.eq.s32.totalorder %v71, %v62
    %vm93 = vcmp.eq.s32.totalorder %v74, %v62
    %vm94 = vcmp.eq.s32.totalorder %v77, %v62
    %vm95 = vcmp.eq.s32.totalorder %v80, %v62
    %vm96 = vcmp.eq.s32.totalorder %v83, %v62
    %vm97 = vcmp.eq.s32.totalorder %v86, %v62
    %vm98 = vcmp.eq.s32.totalorder %v89, %v62
    %v99 = vsel %vm90, 1, 0
    %v100 = vsel %vm91, 1, 0
    %v101 = vsel %vm92, 1, 0
    %v102 = vsel %vm93, 1, 0
    %v103 = vsel %vm94, 1, 0
    %v104 = vsel %vm95, 1, 0
    %v105 = vsel %vm96, 1, 0
    %v106 = vsel %vm97, 1, 0
    %v107 = vsel %vm98, 1, 0
    %v108 = vcvt.s32.f32 %v99
    %v109 = vcvt.s32.f32 %v100
    %v110 = vcvt.s32.f32 %v101
    %v111 = vcvt.s32.f32 %v102
    %v112 = vcvt.s32.f32 %v103
    %v113 = vcvt.s32.f32 %v104
    %v114 = vcvt.s32.f32 %v105
    %v115 = vcvt.s32.f32 %v106
    %v116 = vcvt.s32.f32 %v107
    %v117 = vld [vmem:[%s2] sm:$0xff]
    %v118 = vld [vmem:[%s2 + $0x8] sm:$0xff]
    %v119 = vld [vmem:[%s2 + $0x10] sm:$0xff]
    %v120 = vld [vmem:[%s2 + $0x18] sm:$0xff]
    %v121 = vld [vmem:[%s2 + $0x20] sm:$0xff]
    %v122 = vld [vmem:[%s2 + $0x28] sm:$0xff]
    %v123 = vld [vmem:[%s2 + $0x30] sm:$0xff]
    %v124 = vld [vmem:[%s2 + $0x38] sm:$0xff]
    %v125 = vld [vmem:[%s2 + $0x40] sm:$0xff]
    %v126 = vld [vmem:[%s2 + $0x48] sm:$0xff]
    %v127 = vld [vmem:[%s2 + $0x50] sm:$0xff]
    %v128 = vld [vmem:[%s2 + $0x58] sm:$0xff]
    %v129 = vld [vmem:[%s2 + $0x60] sm:$0xff]
    %v130 = vld [vmem:[%s2 + $0x68] sm:$0xff]
    %v131 = vld [vmem:[%s2 + $0x70] sm:$0xff]
    %v132 = vld [vmem:[%s2 + $0x78] sm:$0xff]
    %vm133 = vcmask 523264
    %v135 = vsel %vm133, %v108, 0
    %v138 = vsel %vm133, %v109, 0
    %v141 = vsel %vm133, %v110, 0
    %v144 = vsel %vm133, %v111, 0
    %v147 = vsel %vm133, %v112, 0
    %v150 = vsel %vm133, %v113, 0
    %v153 = vsel %vm133, %v114, 0
    %v156 = vsel %vm133, %v115, 0
    %v159 = vsel %vm133, %v116, 0
    %161 = vmatprep.subr.mxu0 0.0
    %162 = vmatpush1.msra.mxu0 0.0
    %163 = vmatprep.subr.mxu0 0.0
    %164 = vmatpush1.msra.mxu0 0.0
    %165 = vmatprep.subr.mxu0 0.0
    %166 = vmatpush1.msra.mxu0 0.0
    %167 = vmatprep.subr.mxu0 0.0
    %168 = vmatpush1.msra.mxu0 0.0
    %169 = vmatprep.subr.mxu0 0.0
    %170 = vmatpush1.msra.mxu0 0.0
    %171 = vmatprep.subr.mxu0 0.0
    %172 = vmatpush1.msra.mxu0 0.0
    %173 = vmatprep.subr.mxu0 0.0
    %174 = vmatpush1.msra.mxu0 0.0
    %175 = vmatprep.subr.mxu0 0.0
    %176 = vmatpush1.msra.mxu0 0.0
    %177 = vmatprep.subr.mxu0 %v132
    %178 = vmatpush1.msra.mxu0 %v131
    %179 = vmatprep.subr.mxu0 %v130
    %180 = vmatpush1.msra.mxu0 %v129
    %181 = vmatprep.subr.mxu0 %v128
    %182 = vmatpush1.msra.mxu0 %v127
    %183 = vmatprep.subr.mxu0 %v126
    %184 = vmatpush1.msra.mxu0 %v125
    %185 = vmatprep.subr.mxu0 %v124
    %186 = vmatpush1.msra.mxu0 %v123
    %187 = vmatprep.subr.mxu0 %v122
    %188 = vmatpush1.msra.mxu0 %v121
    %189 = vmatprep.subr.mxu0 %v120
    %190 = vmatpush1.msra.mxu0 %v119
    %191 = vmatprep.subr.mxu0 %v118
    %192 = vmatpush1.msra.mxu0 %v117
    %193 = vmatprep.subr.mxu0 0.0
    %194 = vmatpush2.msra.mxu0 0.0
    %195 = vmatprep.subr.mxu0 0.0
    %196 = vmatpush2.msra.mxu0 0.0
    %197 = vmatprep.subr.mxu0 0.0
    %198 = vmatpush2.msra.mxu0 0.0
    %199 = vmatprep.subr.mxu0 0.0
    %200 = vmatpush2.msra.mxu0 0.0
    %201 = vmatprep.subr.mxu0 0.0
    %202 = vmatpush2.msra.mxu0 0.0
    %203 = vmatprep.subr.mxu0 0.0
    %204 = vmatpush2.msra.mxu0 0.0
    %205 = vmatprep.subr.mxu0 0.0
    %206 = vmatpush2.msra.mxu0 0.0
    %207 = vmatprep.subr.mxu0 0.0
    %208 = vmatpush2.msra.mxu0 0.0
    %209 = vmatprep.subr.mxu0 0.0
    %210 = vmatpush2.msra.mxu0 0.0
    %211 = vmatprep.subr.mxu0 0.0
    %212 = vmatpush2.msra.mxu0 0.0
    %213 = vmatprep.subr.mxu0 0.0
    %214 = vmatpush2.msra.mxu0 0.0
    %215 = vmatprep.subr.mxu0 0.0
    %216 = vmatpush2.msra.mxu0 0.0
    %217 = vmatprep.subr.mxu0 0.0
    %218 = vmatpush2.msra.mxu0 0.0
    %219 = vmatprep.subr.mxu0 0.0
    %220 = vmatpush2.msra.mxu0 0.0
    %221 = vmatprep.subr.mxu0 0.0
    %222 = vmatpush2.msra.mxu0 0.0
    %223 = vmatprep.subr.mxu0 0.0
    %224 = vmatpush2.msra.mxu0 0.0
    %225 = vmatprep.mubr.f32.mxu0 0.0
    %226 = vmatmul.mubr.f32.gmra.mxu0 %v135
    %v227 = vpop.f32.mrf.mxu0
    %v228 = vadd.f32 0.0, %v227
    %v229 = vpop.f32.mrf.mxu0
    %v230 = vadd.f32 0.0, %v229
    %231 = vmatprep.mubr.f32.mxu0 0.0
    %232 = vmatmul.mubr.f32.gmra.mxu0 %v138
    %v233 = vpop.f32.mrf.mxu0
    %v234 = vadd.f32 0.0, %v233
    %v235 = vpop.f32.mrf.mxu0
    %v236 = vadd.f32 0.0, %v235
    %237 = vmatprep.mubr.f32.mxu0 0.0
    %238 = vmatmul.mubr.f32.gmra.mxu0 %v141
    %v239 = vpop.f32.mrf.mxu0
    %v240 = vadd.f32 0.0, %v239
    %v241 = vpop.f32.mrf.mxu0
    %v242 = vadd.f32 0.0, %v241
    %243 = vmatprep.mubr.f32.mxu0 0.0
    %244 = vmatmul.mubr.f32.gmra.mxu0 %v144
    %v245 = vpop.f32.mrf.mxu0
    %v246 = vadd.f32 0.0, %v245
    %v247 = vpop.f32.mrf.mxu0
    %v248 = vadd.f32 0.0, %v247
    %249 = vmatprep.mubr.f32.mxu0 0.0
    %250 = vmatmul.mubr.f32.gmra.mxu0 %v147
    %v251 = vpop.f32.mrf.mxu0
    %v252 = vadd.f32 0.0, %v251
    %v253 = vpop.f32.mrf.mxu0
    %v254 = vadd.f32 0.0, %v253
    %255 = vmatprep.mubr.f32.mxu0 0.0
    %256 = vmatmul.mubr.f32.gmra.mxu0 %v150
    %v257 = vpop.f32.mrf.mxu0
    %v258 = vadd.f32 0.0, %v257
    %v259 = vpop.f32.mrf.mxu0
    %v260 = vadd.f32 0.0, %v259
    %261 = vmatprep.mubr.f32.mxu0 0.0
    %262 = vmatmul.mubr.f32.gmra.mxu0 %v153
    %v263 = vpop.f32.mrf.mxu0
    %v264 = vadd.f32 0.0, %v263
    %v265 = vpop.f32.mrf.mxu0
    %v266 = vadd.f32 0.0, %v265
    %267 = vmatprep.mubr.f32.mxu0 0.0
    %268 = vmatmul.mubr.f32.gmra.mxu0 %v156
    %v269 = vpop.f32.mrf.mxu0
    %v270 = vadd.f32 0.0, %v269
    %v271 = vpop.f32.mrf.mxu0
    %v272 = vadd.f32 0.0, %v271
    %273 = vmatprep.mubr.f32.mxu0 0.0
    %274 = vmatmul.mubr.f32.gmra.mxu0 %v159
    %v275 = vpop.f32.mrf.mxu0
    %v276 = vadd.f32 0.0, %v275
    %v277 = vpop.f32.mrf.mxu0
    %v278 = vadd.f32 0.0, %v277
    %279 = vdwg.mxu0
    %280 = vst [vmem:[#allocation2] sm:$0xff] %v228
    %281 = vst [vmem:[#allocation2 + $0x8] sm:$0xff] %v230
    %282 = vst [vmem:[#allocation2 + $0x10] sm:$0xff] %v234
    %283 = vst [vmem:[#allocation2 + $0x18] sm:$0xff] %v236
    %284 = vst [vmem:[#allocation2 + $0x20] sm:$0xff] %v240
    %285 = vst [vmem:[#allocation2 + $0x28] sm:$0xff] %v242
    %286 = vst [vmem:[#allocation2 + $0x30] sm:$0xff] %v246
    %287 = vst [vmem:[#allocation2 + $0x38] sm:$0xff] %v248
    %288 = vst [vmem:[#allocation2 + $0x40] sm:$0xff] %v252
    %289 = vst [vmem:[#allocation2 + $0x48] sm:$0xff] %v254
    %290 = vst [vmem:[#allocation2 + $0x50] sm:$0xff] %v258
    %291 = vst [vmem:[#allocation2 + $0x58] sm:$0xff] %v260
    %292 = vst [vmem:[#allocation2 + $0x60] sm:$0xff] %v264
    %293 = vst [vmem:[#allocation2 + $0x68] sm:$0xff] %v266
    %294 = vst [vmem:[#allocation2 + $0x70] sm:$0xff] %v270
    %295 = vst [vmem:[#allocation2 + $0x78] sm:$0xff] %v272
    %296 = vst [vmem:[#allocation2 + $0x80] sm:$0xff] %v276
    %297 = vst [vmem:[#allocation2 + $0x88] sm:$0xff] %v278
    %v298 = vld [vmem:[#allocation3] sm:$0xff]
    %v299 = vld [vmem:[#allocation3 + $0x8] sm:$0xff]
    %v300 = vld [vmem:[#allocation3 + $0x10] sm:$0xff]
    %v301 = vld [vmem:[#allocation3 + $0x18] sm:$0xff]
    %v302 = vld [vmem:[#allocation3 + $0x20] sm:$0xff]
    %v303 = vld [vmem:[#allocation3 + $0x28] sm:$0xff]
    %v304 = vld [vmem:[#allocation3 + $0x30] sm:$0xff]
    %v305 = vld [vmem:[#allocation3 + $0x38] sm:$0xff]
    %v306 = vld [vmem:[%s1] sm:$0xff]
    %vm307 = vcmp.lt.s32.totalorder %v62, 32
    %v308 = vsel %vm307, 1, 0
    %v309 = vcvt.s32.f32 %v308
    %v310 = vld [vmem:[#allocation2] sm:$0xff]
    %v311 = vld [vmem:[#allocation2 + $0x8] sm:$0xff]
    %v312 = vxor.u32 %v310, 2147483648
    %v313 = vxor.u32 %v311, 2147483648
    %v314 = vmul.f32 %v312, 1.442695
    %v315 = vpow.pop %v314
    %v316 = vmul.f32 %v313, 1.442695
    %v317 = vpow.pop %v316
    %v318 = vadd.f32 %v315, 1.0
    %v319 = vadd.f32 %v317, 1.0
    %v320 = vrcp.pop %v318
    %v321 = vmul.f32 1.0, %v320
    %v322 = vrcp.pop %v319
    %v323 = vmul.f32 1.0, %v322
    %v324 = vtanh.pop %v311
    %v325 = vmul.f32 %v321, 0.0
    %v326 = vmul.f32 %v321, %v324
    %328 = vrot.lane.b32.xlu0 %v326, 64
    %v329 = vpop.permute.xlu0 %328
    %v331 = vadd.f32 %v325, %v329
    %v332 = vtanh.pop %v331
    %v333 = vmul.f32 %v323, %v332
    %335 = vrot.lane.b32.xlu0 %v309, 64
    %v336 = vpop.permute.xlu0 %335
    %v338 = vmul.f32 %v333, %v336
    %v339 = vmul.f32 %v331, %v336
    %v340 = vld [vmem:[#allocation2 + $0x10] sm:$0xff]
    %v341 = vld [vmem:[#allocation2 + $0x18] sm:$0xff]
    %v342 = vpack.c.bf16 %v338, %v338
    %344 = vrot.lane.b32.xlu0 %v342, 64
    %v345 = vpop.permute.xlu0 %344
    %v354 = vunpack.c.l.b16 %v298
    %v355 = vunpack.c.h.b16 %v298
    %v356 = vunpack.c.l.b16 %v299
    %v357 = vunpack.c.h.b16 %v299
    %v358 = vunpack.c.l.b16 %v300
    %v359 = vunpack.c.h.b16 %v300
    %v360 = vunpack.c.l.b16 %v301
    %v361 = vunpack.c.h.b16 %v301
    %v362 = vunpack.c.l.b16 %v302
    %v363 = vunpack.c.h.b16 %v302
    %v364 = vunpack.c.l.b16 %v303
    %v365 = vunpack.c.h.b16 %v303
    %v366 = vunpack.c.l.b16 %v304
    %v367 = vunpack.c.h.b16 %v304
    %v368 = vunpack.c.l.b16 %v305
    %v369 = vunpack.c.h.b16 %v305
    %v370 = vpack.c.b16 %v356, %v354
    %v371 = vpack.c.b16 %v357, %v355
    %v372 = vpack.c.b16 %v360, %v358
    %v373 = vpack.c.b16 %v361, %v359
    %v374 = vpack.c.b16 %v364, %v362
    %v375 = vpack.c.b16 %v365, %v363
    %v376 = vpack.c.b16 %v368, %v366
    %v377 = vpack.c.b16 %v369, %v367
    %v387 = vsel %vm133, %v345, 0
    %389 = vmatprep.subr.bf16.mxu0 0
    %390 = vmatpush1.bf16.msra.mxu0 0
    %391 = vmatprep.subr.bf16.mxu0 0
    %392 = vmatpush1.bf16.msra.mxu0 0
    %393 = vmatprep.subr.bf16.mxu0 0
    %394 = vmatpush1.bf16.msra.mxu0 0
    %395 = vmatprep.subr.bf16.mxu0 0
    %396 = vmatpush1.bf16.msra.mxu0 0
    %397 = vmatprep.subr.bf16.mxu0 %v377
    %398 = vmatpush1.bf16.msra.mxu0 %v376
    %399 = vmatprep.subr.bf16.mxu0 %v375
    %400 = vmatpush1.bf16.msra.mxu0 %v374
    %401 = vmatprep.subr.bf16.mxu0 %v373
    %402 = vmatpush1.bf16.msra.mxu0 %v372
    %403 = vmatprep.subr.bf16.mxu0 %v371
    %404 = vmatpush1.bf16.msra.mxu0 %v370
    %405 = vmatprep.subr.bf16.mxu0 0
    %406 = vmatpush2.bf16.msra.mxu0 0
    %407 = vmatprep.subr.bf16.mxu0 0
    %408 = vmatpush2.bf16.msra.mxu0 0
    %409 = vmatprep.subr.bf16.mxu0 0
    %410 = vmatpush2.bf16.msra.mxu0 0
    %411 = vmatprep.subr.bf16.mxu0 0
    %412 = vmatpush2.bf16.msra.mxu0 0
    %413 = vmatprep.subr.bf16.mxu0 0
    %414 = vmatpush2.bf16.msra.mxu0 0
    %415 = vmatprep.subr.bf16.mxu0 0
    %416 = vmatpush2.bf16.msra.mxu0 0
    %417 = vmatprep.subr.bf16.mxu0 0
    %418 = vmatpush2.bf16.msra.mxu0 0
    %419 = vmatprep.subr.bf16.mxu0 0
    %420 = vmatpush2.bf16.msra.mxu0 0
    %421 = vmatprep.mubr.bf16.mxu0 0
    %422 = vmatmul.mubr.bf16.gmra.mxu0 %v387
    %v423 = vpop.f32.mrf.mxu0
    %v424 = vadd.f32 0.0, %v423
    %v425 = vpop.f32.mrf.mxu0
    %v426 = vadd.f32 0.0, %v425
    %v427 = vpop.f32.mrf.mxu0
    %v428 = vpop.f32.mrf.mxu0
    %429 = vdwg.mxu0
    %v430 = vadd.f32 %v340, %v424
    %v431 = vadd.f32 %v341, %v426
    %v432 = vxor.u32 %v430, 2147483648
    %v433 = vxor.u32 %v431, 2147483648
    %v434 = vmul.f32 %v432, 1.442695
    %v435 = vpow.pop %v434
    %v436 = vmul.f32 %v433, 1.442695
    %v437 = vpow.pop %v436
    %v438 = vadd.f32 %v435, 1.0
    %v439 = vadd.f32 %v437, 1.0
    %v440 = vrcp.pop %v438
    %v441 = vmul.f32 1.0, %v440
    %v442 = vrcp.pop %v439
    %v443 = vmul.f32 1.0, %v442
    %v444 = vtanh.pop %v431
    %v445 = vmul.f32 %v441, %v339
    %v446 = vmul.f32 %v441, %v444
    %448 = vrot.lane.b32.xlu0 %v446, 64
    %v449 = vpop.permute.xlu0 %448
    %v451 = vadd.f32 %v445, %v449
    %v452 = vtanh.pop %v451
    %v453 = vmul.f32 %v443, %v452
    %vm454 = vcmp.eq.s32.totalorder %v306, 1
    %v455 = vsel %vm454, 1, 0
    %456 = vset.pattern.permute.xlu0 0
    %457 = vperm.xlu0 %456, %v455
    %v458 = vpop.permute.xlu0 %457
    %vm459 = vcmp.eq.s32.totalorder %v458, 1
    %v460 = vsel %vm459, %v453, 0.0
    %v461 = vld [vmem:[#allocation2 + $0x20] sm:$0xff]
    %v462 = vld [vmem:[#allocation2 + $0x28] sm:$0xff]
    %v463 = vpack.c.bf16 %v453, %v453
    %465 = vrot.lane.b32.xlu0 %v463, 64
    %v466 = vpop.permute.xlu0 %465
    %v468 = vsel %vm133, %v466, 0
    %470 = vmatprep.subr.bf16.mxu0 0
    %471 = vmatpush1.bf16.msra.mxu0 0
    %472 = vmatprep.subr.bf16.mxu0 0
    %473 = vmatpush1.bf16.msra.mxu0 0
    %474 = vmatprep.subr.bf16.mxu0 0
    %475 = vmatpush1.bf16.msra.mxu0 0
    %476 = vmatprep.subr.bf16.mxu0 0
    %477 = vmatpush1.bf16.msra.mxu0 0
    %478 = vmatprep.subr.bf16.mxu0 %v377
    %479 = vmatpush1.bf16.msra.mxu0 %v376
    %480 = vmatprep.subr.bf16.mxu0 %v375
    %481 = vmatpush1.bf16.msra.mxu0 %v374
    %482 = vmatprep.subr.bf16.mxu0 %v373
    %483 = vmatpush1.bf16.msra.mxu0 %v372
    %484 = vmatprep.subr.bf16.mxu0 %v371
    %485 = vmatpush1.bf16.msra.mxu0 %v370
    %486 = vmatprep.subr.bf16.mxu0 0
    %487 = vmatpush2.bf16.msra.mxu0 0
    %488 = vmatprep.subr.bf16.mxu0 0
    %489 = vmatpush2.bf16.msra.mxu0 0
    %490 = vmatprep.subr.bf16.mxu0 0
    %491 = vmatpush2.bf16.msra.mxu0 0
    %492 = vmatprep.subr.bf16.mxu0 0
    %493 = vmatpush2.bf16.msra.mxu0 0
    %494 = vmatprep.subr.bf16.mxu0 0
    %495 = vmatpush2.bf16.msra.mxu0 0
    %496 = vmatprep.subr.bf16.mxu0 0
    %497 = vmatpush2.bf16.msra.mxu0 0
    %498 = vmatprep.subr.bf16.mxu0 0
    %499 = vmatpush2.bf16.msra.mxu0 0
    %500 = vmatprep.subr.bf16.mxu0 0
    %501 = vmatpush2.bf16.msra.mxu0 0
    %502 = vmatprep.mubr.bf16.mxu0 0
    %503 = vmatmul.mubr.bf16.gmra.mxu0 %v468
    %v504 = vpop.f32.mrf.mxu0
    %v505 = vadd.f32 0.0, %v504
    %v506 = vpop.f32.mrf.mxu0
    %v507 = vadd.f32 0.0, %v506
    %v508 = vpop.f32.mrf.mxu0
    %v509 = vpop.f32.mrf.mxu0
    %510 = vdwg.mxu0
    %v511 = vadd.f32 %v461, %v505
    %v512 = vadd.f32 %v462, %v507
    %v513 = vxor.u32 %v511, 2147483648
    %v514 = vxor.u32 %v512, 2147483648
    %v515 = vmul.f32 %v513, 1.442695
    %v516 = vpow.pop %v515
    %v517 = vmul.f32 %v514, 1.442695
    %v518 = vpow.pop %v517
    %v519 = vadd.f32 %v516, 1.0
    %v520 = vadd.f32 %v518, 1.0
    %v521 = vrcp.pop %v519
    %v522 = vmul.f32 1.0, %v521
    %v523 = vrcp.pop %v520
    %v524 = vmul.f32 1.0, %v523
    %v525 = vtanh.pop %v512
    %v526 = vmul.f32 %v522, %v451
    %v527 = vmul.f32 %v522, %v525
    %529 = vrot.lane.b32.xlu0 %v527, 64
    %v530 = vpop.permute.xlu0 %529
    %v532 = vadd.f32 %v526, %v530
    %v533 = vtanh.pop %v532
    %v534 = vmul.f32 %v524, %v533
    %vm535 = vcmp.eq.s32.totalorder %v306, 2
    %v536 = vsel %vm535, 1, 0
    %537 = vset.pattern.permute.xlu0 0
    %538 = vperm.xlu0 %537, %v536
    %v539 = vpop.permute.xlu0 %538
    %vm540 = vcmp.eq.s32.totalorder %v539, 1
    %v541 = vsel %vm540, %v534, %v460
    %v542 = vld [vmem:[#allocation2 + $0x30] sm:$0xff]
    %v543 = vld [vmem:[#allocation2 + $0x38] sm:$0xff]
    %v544 = vpack.c.bf16 %v534, %v534
    %546 = vrot.lane.b32.xlu0 %v544, 64
    %v547 = vpop.permute.xlu0 %546
    %v549 = vsel %vm133, %v547, 0
    %551 = vmatprep.subr.bf16.mxu0 0
    %552 = vmatpush1.bf16.msra.mxu0 0
    %553 = vmatprep.subr.bf16.mxu0 0
    %554 = vmatpush1.bf16.msra.mxu0 0
    %555 = vmatprep.subr.bf16.mxu0 0
    %556 = vmatpush1.bf16.msra.mxu0 0
    %557 = vmatprep.subr.bf16.mxu0 0
    %558 = vmatpush1.bf16.msra.mxu0 0
    %559 = vmatprep.subr.bf16.mxu0 %v377
    %560 = vmatpush1.bf16.msra.mxu0 %v376
    %561 = vmatprep.subr.bf16.mxu0 %v375
    %562 = vmatpush1.bf16.msra.mxu0 %v374
    %563 = vmatprep.subr.bf16.mxu0 %v373
    %564 = vmatpush1.bf16.msra.mxu0 %v372
    %565 = vmatprep.subr.bf16.mxu0 %v371
    %566 = vmatpush1.bf16.msra.mxu0 %v370
    %567 = vmatprep.subr.bf16.mxu0 0
    %568 = vmatpush2.bf16.msra.mxu0 0
    %569 = vmatprep.subr.bf16.mxu0 0
    %570 = vmatpush2.bf16.msra.mxu0 0
    %571 = vmatprep.subr.bf16.mxu0 0
    %572 = vmatpush2.bf16.msra.mxu0 0
    %573 = vmatprep.subr.bf16.mxu0 0
    %574 = vmatpush2.bf16.msra.mxu0 0
    %575 = vmatprep.subr.bf16.mxu0 0
    %576 = vmatpush2.bf16.msra.mxu0 0
    %577 = vmatprep.subr.bf16.mxu0 0
    %578 = vmatpush2.bf16.msra.mxu0 0
    %579 = vmatprep.subr.bf16.mxu0 0
    %580 = vmatpush2.bf16.msra.mxu0 0
    %581 = vmatprep.subr.bf16.mxu0 0
    %582 = vmatpush2.bf16.msra.mxu0 0
    %583 = vmatprep.mubr.bf16.mxu0 0
    %584 = vmatmul.mubr.bf16.gmra.mxu0 %v549
    %v585 = vpop.f32.mrf.mxu0
    %v586 = vadd.f32 0.0, %v585
    %v587 = vpop.f32.mrf.mxu0
    %v588 = vadd.f32 0.0, %v587
    %v589 = vpop.f32.mrf.mxu0
    %v590 = vpop.f32.mrf.mxu0
    %591 = vdwg.mxu0
    %v592 = vadd.f32 %v542, %v586
    %v593 = vadd.f32 %v543, %v588
    %v594 = vxor.u32 %v592, 2147483648
    %v595 = vxor.u32 %v593, 2147483648
    %v596 = vmul.f32 %v594, 1.442695
    %v597 = vpow.pop %v596
    %v598 = vmul.f32 %v595, 1.442695
    %v599 = vpow.pop %v598
    %v600 = vadd.f32 %v597, 1.0
    %v601 = vadd.f32 %v599, 1.0
    %v602 = vrcp.pop %v600
    %v603 = vmul.f32 1.0, %v602
    %v604 = vrcp.pop %v601
    %v605 = vmul.f32 1.0, %v604
    %v606 = vtanh.pop %v593
    %v607 = vmul.f32 %v603, %v532
    %v608 = vmul.f32 %v603, %v606
    %610 = vrot.lane.b32.xlu0 %v608, 64
    %v611 = vpop.permute.xlu0 %610
    %v613 = vadd.f32 %v607, %v611
    %v614 = vtanh.pop %v613
    %v615 = vmul.f32 %v605, %v614
    %vm616 = vcmp.eq.s32.totalorder %v306, 3
    %v617 = vsel %vm616, 1, 0
    %618 = vset.pattern.permute.xlu0 0
    %619 = vperm.xlu0 %618, %v617
    %v620 = vpop.permute.xlu0 %619
    %vm621 = vcmp.eq.s32.totalorder %v620, 1
    %v622 = vsel %vm621, %v615, %v541
    %v623 = vld [vmem:[#allocation2 + $0x40] sm:$0xff]
    %v624 = vld [vmem:[#allocation2 + $0x48] sm:$0xff]
    %v625 = vpack.c.bf16 %v615, %v615
    %627 = vrot.lane.b32.xlu0 %v625, 64
    %v628 = vpop.permute.xlu0 %627
    %v630 = vsel %vm133, %v628, 0
    %632 = vmatprep.subr.bf16.mxu0 0
    %633 = vmatpush1.bf16.msra.mxu0 0
    %634 = vmatprep.subr.bf16.mxu0 0
    %635 = vmatpush1.bf16.msra.mxu0 0
    %636 = vmatprep.subr.bf16.mxu0 0
    %637 = vmatpush1.bf16.msra.mxu0 0
    %638 = vmatprep.subr.bf16.mxu0 0
    %639 = vmatpush1.bf16.msra.mxu0 0
    %640 = vmatprep.subr.bf16.mxu0 %v377
    %641 = vmatpush1.bf16.msra.mxu0 %v376
    %642 = vmatprep.subr.bf16.mxu0 %v375
    %643 = vmatpush1.bf16.msra.mxu0 %v374
    %644 = vmatprep.subr.bf16.mxu0 %v373
    %645 = vmatpush1.bf16.msra.mxu0 %v372
    %646 = vmatprep.subr.bf16.mxu0 %v371
    %647 = vmatpush1.bf16.msra.mxu0 %v370
    %648 = vmatprep.subr.bf16.mxu0 0
    %649 = vmatpush2.bf16.msra.mxu0 0
    %650 = vmatprep.subr.bf16.mxu0 0
    %651 = vmatpush2.bf16.msra.mxu0 0
    %652 = vmatprep.subr.bf16.mxu0 0
    %653 = vmatpush2.bf16.msra.mxu0 0
    %654 = vmatprep.subr.bf16.mxu0 0
    %655 = vmatpush2.bf16.msra.mxu0 0
    %656 = vmatprep.subr.bf16.mxu0 0
    %657 = vmatpush2.bf16.msra.mxu0 0
    %658 = vmatprep.subr.bf16.mxu0 0
    %659 = vmatpush2.bf16.msra.mxu0 0
    %660 = vmatprep.subr.bf16.mxu0 0
    %661 = vmatpush2.bf16.msra.mxu0 0
    %662 = vmatprep.subr.bf16.mxu0 0
    %663 = vmatpush2.bf16.msra.mxu0 0
    %664 = vmatprep.mubr.bf16.mxu0 0
    %665 = vmatmul.mubr.bf16.gmra.mxu0 %v630
    %v666 = vpop.f32.mrf.mxu0
    %v667 = vadd.f32 0.0, %v666
    %v668 = vpop.f32.mrf.mxu0
    %v669 = vadd.f32 0.0, %v668
    %v670 = vpop.f32.mrf.mxu0
    %v671 = vpop.f32.mrf.mxu0
    %672 = vdwg.mxu0
    %v673 = vadd.f32 %v623, %v667
    %v674 = vadd.f32 %v624, %v669
    %v675 = vxor.u32 %v673, 2147483648
    %v676 = vxor.u32 %v674, 2147483648
    %v677 = vmul.f32 %v675, 1.442695
    %v678 = vpow.pop %v677
    %v679 = vmul.f32 %v676, 1.442695
    %v680 = vpow.pop %v679
    %v681 = vadd.f32 %v678, 1.0
    %v682 = vadd.f32 %v680, 1.0
    %v683 = vrcp.pop %v681
    %v684 = vmul.f32 1.0, %v683
    %v685 = vrcp.pop %v682
    %v686 = vmul.f32 1.0, %v685
    %v687 = vtanh.pop %v674
    %v688 = vmul.f32 %v684, %v613
    %v689 = vmul.f32 %v684, %v687
    %691 = vrot.lane.b32.xlu0 %v689, 64
    %v692 = vpop.permute.xlu0 %691
    %v694 = vadd.f32 %v688, %v692
    %v695 = vtanh.pop %v694
    %v696 = vmul.f32 %v686, %v695
    %vm697 = vcmp.eq.s32.totalorder %v306, 4
    %v698 = vsel %vm697, 1, 0
    %699 = vset.pattern.permute.xlu0 0
    %700 = vperm.xlu0 %699, %v698
    %v701 = vpop.permute.xlu0 %700
    %vm702 = vcmp.eq.s32.totalorder %v701, 1
    %v703 = vsel %vm702, %v696, %v622
    %v704 = vld [vmem:[#allocation2 + $0x50] sm:$0xff]
    %v705 = vld [vmem:[#allocation2 + $0x58] sm:$0xff]
    %v706 = vpack.c.bf16 %v696, %v696
    %708 = vrot.lane.b32.xlu0 %v706, 64
    %v709 = vpop.permute.xlu0 %708
    %v711 = vsel %vm133, %v709, 0
    %713 = vmatprep.subr.bf16.mxu0 0
    %714 = vmatpush1.bf16.msra.mxu0 0
    %715 = vmatprep.subr.bf16.mxu0 0
    %716 = vmatpush1.bf16.msra.mxu0 0
    %717 = vmatprep.subr.bf16.mxu0 0
    %718 = vmatpush1.bf16.msra.mxu0 0
    %719 = vmatprep.subr.bf16.mxu0 0
    %720 = vmatpush1.bf16.msra.mxu0 0
    %721 = vmatprep.subr.bf16.mxu0 %v377
    %722 = vmatpush1.bf16.msra.mxu0 %v376
    %723 = vmatprep.subr.bf16.mxu0 %v375
    %724 = vmatpush1.bf16.msra.mxu0 %v374
    %725 = vmatprep.subr.bf16.mxu0 %v373
    %726 = vmatpush1.bf16.msra.mxu0 %v372
    %727 = vmatprep.subr.bf16.mxu0 %v371
    %728 = vmatpush1.bf16.msra.mxu0 %v370
    %729 = vmatprep.subr.bf16.mxu0 0
    %730 = vmatpush2.bf16.msra.mxu0 0
    %731 = vmatprep.subr.bf16.mxu0 0
    %732 = vmatpush2.bf16.msra.mxu0 0
    %733 = vmatprep.subr.bf16.mxu0 0
    %734 = vmatpush2.bf16.msra.mxu0 0
    %735 = vmatprep.subr.bf16.mxu0 0
    %736 = vmatpush2.bf16.msra.mxu0 0
    %737 = vmatprep.subr.bf16.mxu0 0
    %738 = vmatpush2.bf16.msra.mxu0 0
    %739 = vmatprep.subr.bf16.mxu0 0
    %740 = vmatpush2.bf16.msra.mxu0 0
    %741 = vmatprep.subr.bf16.mxu0 0
    %742 = vmatpush2.bf16.msra.mxu0 0
    %743 = vmatprep.subr.bf16.mxu0 0
    %744 = vmatpush2.bf16.msra.mxu0 0
    %745 = vmatprep.mubr.bf16.mxu0 0
    %746 = vmatmul.mubr.bf16.gmra.mxu0 %v711
    %v747 = vpop.f32.mrf.mxu0
    %v748 = vadd.f32 0.0, %v747
    %v749 = vpop.f32.mrf.mxu0
    %v750 = vadd.f32 0.0, %v749
    %v751 = vpop.f32.mrf.mxu0
    %v752 = vpop.f32.mrf.mxu0
    %753 = vdwg.mxu0
    %v754 = vadd.f32 %v704, %v748
    %v755 = vadd.f32 %v705, %v750
    %v756 = vxor.u32 %v754, 2147483648
    %v757 = vxor.u32 %v755, 2147483648
    %v758 = vmul.f32 %v756, 1.442695
    %v759 = vpow.pop %v758
    %v760 = vmul.f32 %v757, 1.442695
    %v761 = vpow.pop %v760
    %v762 = vadd.f32 %v759, 1.0
    %v763 = vadd.f32 %v761, 1.0
    %v764 = vrcp.pop %v762
    %v765 = vmul.f32 1.0, %v764
    %v766 = vrcp.pop %v763
    %v767 = vmul.f32 1.0, %v766
    %v768 = vtanh.pop %v755
    %v769 = vmul.f32 %v765, %v694
    %v770 = vmul.f32 %v765, %v768
    %772 = vrot.lane.b32.xlu0 %v770, 64
    %v773 = vpop.permute.xlu0 %772
    %v775 = vadd.f32 %v769, %v773
    %v776 = vtanh.pop %v775
    %v777 = vmul.f32 %v767, %v776
    %vm778 = vcmp.eq.s32.totalorder %v306, 5
    %v779 = vsel %vm778, 1, 0
    %780 = vset.pattern.permute.xlu0 0
    %781 = vperm.xlu0 %780, %v779
    %v782 = vpop.permute.xlu0 %781
    %vm783 = vcmp.eq.s32.totalorder %v782, 1
    %v784 = vsel %vm783, %v777, %v703
    %v785 = vld [vmem:[#allocation2 + $0x60] sm:$0xff]
    %v786 = vld [vmem:[#allocation2 + $0x68] sm:$0xff]
    %v787 = vpack.c.bf16 %v777, %v777
    %789 = vrot.lane.b32.xlu0 %v787, 64
    %v790 = vpop.permute.xlu0 %789
    %v792 = vsel %vm133, %v790, 0
    %794 = vmatprep.subr.bf16.mxu0 0
    %795 = vmatpush1.bf16.msra.mxu0 0
    %796 = vmatprep.subr.bf16.mxu0 0
    %797 = vmatpush1.bf16.msra.mxu0 0
    %798 = vmatprep.subr.bf16.mxu0 0
    %799 = vmatpush1.bf16.msra.mxu0 0
    %800 = vmatprep.subr.bf16.mxu0 0
    %801 = vmatpush1.bf16.msra.mxu0 0
    %802 = vmatprep.subr.bf16.mxu0 %v377
    %803 = vmatpush1.bf16.msra.mxu0 %v376
    %804 = vmatprep.subr.bf16.mxu0 %v375
    %805 = vmatpush1.bf16.msra.mxu0 %v374
    %806 = vmatprep.subr.bf16.mxu0 %v373
    %807 = vmatpush1.bf16.msra.mxu0 %v372
    %808 = vmatprep.subr.bf16.mxu0 %v371
    %809 = vmatpush1.bf16.msra.mxu0 %v370
    %810 = vmatprep.subr.bf16.mxu0 0
    %811 = vmatpush2.bf16.msra.mxu0 0
    %812 = vmatprep.subr.bf16.mxu0 0
    %813 = vmatpush2.bf16.msra.mxu0 0
    %814 = vmatprep.subr.bf16.mxu0 0
    %815 = vmatpush2.bf16.msra.mxu0 0
    %816 = vmatprep.subr.bf16.mxu0 0
    %817 = vmatpush2.bf16.msra.mxu0 0
    %818 = vmatprep.subr.bf16.mxu0 0
    %819 = vmatpush2.bf16.msra.mxu0 0
    %820 = vmatprep.subr.bf16.mxu0 0
    %821 = vmatpush2.bf16.msra.mxu0 0
    %822 = vmatprep.subr.bf16.mxu0 0
    %823 = vmatpush2.bf16.msra.mxu0 0
    %824 = vmatprep.subr.bf16.mxu0 0
    %825 = vmatpush2.bf16.msra.mxu0 0
    %826 = vmatprep.mubr.bf16.mxu0 0
    %827 = vmatmul.mubr.bf16.gmra.mxu0 %v792
    %v828 = vpop.f32.mrf.mxu0
    %v829 = vadd.f32 0.0, %v828
    %v830 = vpop.f32.mrf.mxu0
    %v831 = vadd.f32 0.0, %v830
    %v832 = vpop.f32.mrf.mxu0
    %v833 = vpop.f32.mrf.mxu0
    %834 = vdwg.mxu0
    %v835 = vadd.f32 %v785, %v829
    %v836 = vadd.f32 %v786, %v831
    %v837 = vxor.u32 %v835, 2147483648
    %v838 = vxor.u32 %v836, 2147483648
    %v839 = vmul.f32 %v837, 1.442695
    %v840 = vpow.pop %v839
    %v841 = vmul.f32 %v838, 1.442695
    %v842 = vpow.pop %v841
    %v843 = vadd.f32 %v840, 1.0
    %v844 = vadd.f32 %v842, 1.0
    %v845 = vrcp.pop %v843
    %v846 = vmul.f32 1.0, %v845
    %v847 = vrcp.pop %v844
    %v848 = vmul.f32 1.0, %v847
    %v849 = vtanh.pop %v836
    %v850 = vmul.f32 %v846, %v775
    %v851 = vmul.f32 %v846, %v849
    %853 = vrot.lane.b32.xlu0 %v851, 64
    %v854 = vpop.permute.xlu0 %853
    %v856 = vadd.f32 %v850, %v854
    %v857 = vtanh.pop %v856
    %v858 = vmul.f32 %v848, %v857
    %vm859 = vcmp.eq.s32.totalorder %v306, 6
    %v860 = vsel %vm859, 1, 0
    %861 = vset.pattern.permute.xlu0 0
    %862 = vperm.xlu0 %861, %v860
    %v863 = vpop.permute.xlu0 %862
    %vm864 = vcmp.eq.s32.totalorder %v863, 1
    %v865 = vsel %vm864, %v858, %v784
    %v866 = vld [vmem:[#allocation2 + $0x70] sm:$0xff]
    %v867 = vld [vmem:[#allocation2 + $0x78] sm:$0xff]
    %v868 = vpack.c.bf16 %v858, %v858
    %870 = vrot.lane.b32.xlu0 %v868, 64
    %v871 = vpop.permute.xlu0 %870
    %v873 = vsel %vm133, %v871, 0
    %875 = vmatprep.subr.bf16.mxu0 0
    %876 = vmatpush1.bf16.msra.mxu0 0
    %877 = vmatprep.subr.bf16.mxu0 0
    %878 = vmatpush1.bf16.msra.mxu0 0
    %879 = vmatprep.subr.bf16.mxu0 0
    %880 = vmatpush1.bf16.msra.mxu0 0
    %881 = vmatprep.subr.bf16.mxu0 0
    %882 = vmatpush1.bf16.msra.mxu0 0
    %883 = vmatprep.subr.bf16.mxu0 %v377
    %884 = vmatpush1.bf16.msra.mxu0 %v376
    %885 = vmatprep.subr.bf16.mxu0 %v375
    %886 = vmatpush1.bf16.msra.mxu0 %v374
    %887 = vmatprep.subr.bf16.mxu0 %v373
    %888 = vmatpush1.bf16.msra.mxu0 %v372
    %889 = vmatprep.subr.bf16.mxu0 %v371
    %890 = vmatpush1.bf16.msra.mxu0 %v370
    %891 = vmatprep.subr.bf16.mxu0 0
    %892 = vmatpush2.bf16.msra.mxu0 0
    %893 = vmatprep.subr.bf16.mxu0 0
    %894 = vmatpush2.bf16.msra.mxu0 0
    %895 = vmatprep.subr.bf16.mxu0 0
    %896 = vmatpush2.bf16.msra.mxu0 0
    %897 = vmatprep.subr.bf16.mxu0 0
    %898 = vmatpush2.bf16.msra.mxu0 0
    %899 = vmatprep.subr.bf16.mxu0 0
    %900 = vmatpush2.bf16.msra.mxu0 0
    %901 = vmatprep.subr.bf16.mxu0 0
    %902 = vmatpush2.bf16.msra.mxu0 0
    %903 = vmatprep.subr.bf16.mxu0 0
    %904 = vmatpush2.bf16.msra.mxu0 0
    %905 = vmatprep.subr.bf16.mxu0 0
    %906 = vmatpush2.bf16.msra.mxu0 0
    %907 = vmatprep.mubr.bf16.mxu0 0
    %908 = vmatmul.mubr.bf16.gmra.mxu0 %v873
    %v909 = vpop.f32.mrf.mxu0
    %v910 = vadd.f32 0.0, %v909
    %v911 = vpop.f32.mrf.mxu0
    %v912 = vadd.f32 0.0, %v911
    %v913 = vpop.f32.mrf.mxu0
    %v914 = vpop.f32.mrf.mxu0
    %915 = vdwg.mxu0
    %v916 = vadd.f32 %v866, %v910
    %v917 = vadd.f32 %v867, %v912
    %v918 = vxor.u32 %v916, 2147483648
    %v919 = vxor.u32 %v917, 2147483648
    %v920 = vmul.f32 %v918, 1.442695
    %v921 = vpow.pop %v920
    %v922 = vmul.f32 %v919, 1.442695
    %v923 = vpow.pop %v922
    %v924 = vadd.f32 %v921, 1.0
    %v925 = vadd.f32 %v923, 1.0
    %v926 = vrcp.pop %v924
    %v927 = vmul.f32 1.0, %v926
    %v928 = vrcp.pop %v925
    %v929 = vmul.f32 1.0, %v928
    %v930 = vtanh.pop %v917
    %v931 = vmul.f32 %v927, %v856
    %v932 = vmul.f32 %v927, %v930
    %934 = vrot.lane.b32.xlu0 %v932, 64
    %v935 = vpop.permute.xlu0 %934
    %v937 = vadd.f32 %v931, %v935
    %v938 = vtanh.pop %v937
    %v939 = vmul.f32 %v929, %v938
    %vm940 = vcmp.eq.s32.totalorder %v306, 7
    %v941 = vsel %vm940, 1, 0
    %942 = vset.pattern.permute.xlu0 0
    %943 = vperm.xlu0 %942, %v941
    %v944 = vpop.permute.xlu0 %943
    %vm945 = vcmp.eq.s32.totalorder %v944, 1
    %v946 = vsel %vm945, %v939, %v865
    %v947 = vld [vmem:[#allocation2 + $0x80] sm:$0xff]
    %v948 = vld [vmem:[#allocation2 + $0x88] sm:$0xff]
    %v949 = vpack.c.bf16 %v939, %v939
    %951 = vrot.lane.b32.xlu0 %v949, 64
    %v952 = vpop.permute.xlu0 %951
    %v954 = vsel %vm133, %v952, 0
    %956 = vmatprep.subr.bf16.mxu0 0
    %957 = vmatpush1.bf16.msra.mxu0 0
    %958 = vmatprep.subr.bf16.mxu0 0
    %959 = vmatpush1.bf16.msra.mxu0 0
    %960 = vmatprep.subr.bf16.mxu0 0
    %961 = vmatpush1.bf16.msra.mxu0 0
    %962 = vmatprep.subr.bf16.mxu0 0
    %963 = vmatpush1.bf16.msra.mxu0 0
    %964 = vmatprep.subr.bf16.mxu0 %v377
    %965 = vmatpush1.bf16.msra.mxu0 %v376
    %966 = vmatprep.subr.bf16.mxu0 %v375
    %967 = vmatpush1.bf16.msra.mxu0 %v374
    %968 = vmatprep.subr.bf16.mxu0 %v373
    %969 = vmatpush1.bf16.msra.mxu0 %v372
    %970 = vmatprep.subr.bf16.mxu0 %v371
    %971 = vmatpush1.bf16.msra.mxu0 %v370
    %972 = vmatprep.subr.bf16.mxu0 0
    %973 = vmatpush2.bf16.msra.mxu0 0
    %974 = vmatprep.subr.bf16.mxu0 0
    %975 = vmatpush2.bf16.msra.mxu0 0
    %976 = vmatprep.subr.bf16.mxu0 0
    %977 = vmatpush2.bf16.msra.mxu0 0
    %978 = vmatprep.subr.bf16.mxu0 0
    %979 = vmatpush2.bf16.msra.mxu0 0
    %980 = vmatprep.subr.bf16.mxu0 0
    %981 = vmatpush2.bf16.msra.mxu0 0
    %982 = vmatprep.subr.bf16.mxu0 0
    %983 = vmatpush2.bf16.msra.mxu0 0
    %984 = vmatprep.subr.bf16.mxu0 0
    %985 = vmatpush2.bf16.msra.mxu0 0
    %986 = vmatprep.subr.bf16.mxu0 0
    %987 = vmatpush2.bf16.msra.mxu0 0
    %988 = vmatprep.mubr.bf16.mxu0 0
    %989 = vmatmul.mubr.bf16.gmra.mxu0 %v954
    %v990 = vpop.f32.mrf.mxu0
    %v991 = vadd.f32 0.0, %v990
    %v992 = vpop.f32.mrf.mxu0
    %v993 = vadd.f32 0.0, %v992
    %v994 = vpop.f32.mrf.mxu0
    %v995 = vpop.f32.mrf.mxu0
    %996 = vdwg.mxu0
    %v997 = vadd.f32 %v947, %v991
    %v998 = vadd.f32 %v948, %v993
    %v999 = vxor.u32 %v997, 2147483648
    %v1000 = vxor.u32 %v998, 2147483648
    %v1001 = vmul.f32 %v999, 1.442695
    %v1002 = vpow.pop %v1001
    %v1003 = vmul.f32 %v1000, 1.442695
    %v1004 = vpow.pop %v1003
    %v1005 = vadd.f32 %v1002, 1.0
    %v1006 = vadd.f32 %v1004, 1.0
    %v1007 = vrcp.pop %v1005
    %v1008 = vmul.f32 1.0, %v1007
    %v1009 = vrcp.pop %v1006
    %v1010 = vmul.f32 1.0, %v1009
    %v1011 = vtanh.pop %v998
    %v1012 = vmul.f32 %v1008, %v937
    %v1013 = vmul.f32 %v1008, %v1011
    %1015 = vrot.lane.b32.xlu0 %v1013, 64
    %v1016 = vpop.permute.xlu0 %1015
    %v1018 = vadd.f32 %v1012, %v1016
    %v1019 = vtanh.pop %v1018
    %v1020 = vmul.f32 %v1010, %v1019
    %vm1021 = vcmp.eq.s32.totalorder %v306, 8
    %v1022 = vsel %vm1021, 1, 0
    %1023 = vset.pattern.permute.xlu0 0
    %1024 = vperm.xlu0 %1023, %v1022
    %v1025 = vpop.permute.xlu0 %1024
    %vm1026 = vcmp.eq.s32.totalorder %v1025, 1
    %v1027 = vsel %vm1026, %v1020, %v946
    %v1028 = vld [vmem:[#allocation5] sm:$0xff]
    %v1029 = vld [vmem:[#allocation5 + $0x8] sm:$0xff]
    %v1030 = vld [vmem:[#allocation5 + $0x10] sm:$0xff]
    %v1031 = vld [vmem:[#allocation5 + $0x18] sm:$0xff]
    %v1032 = vld [vmem:[%s5] sm:$0x1]
    %v1034 = vlaneseq
    %v1035 = vshrl.u32 %v1034, 7
    %v1036 = vsub.s32 0, %v1035
    %v1037 = vrot.slane %v1032, %v1036
    %1040 = vrot.lane.b32.xlu0 %v1027, 32
    %v1041 = vpop.permute.xlu0 %1040
    %vm1042 = vcmask 261120
    %v1043 = vsel %vm1042, %v1041, 0
    %1045 = vmatprep.subr.mxu0 0.0
    %1046 = vmatpush1.msra.mxu0 0.0
    %1047 = vmatprep.subr.mxu0 0.0
    %1048 = vmatpush1.msra.mxu0 0.0
    %1049 = vmatprep.subr.mxu0 0.0
    %1050 = vmatpush1.msra.mxu0 0.0
    %1051 = vmatprep.subr.mxu0 0.0
    %1052 = vmatpush1.msra.mxu0 0.0
    %1053 = vmatprep.subr.mxu0 0.0
    %1054 = vmatpush1.msra.mxu0 0.0
    %1055 = vmatprep.subr.mxu0 0.0
    %1056 = vmatpush1.msra.mxu0 0.0
    %1057 = vmatprep.subr.mxu0 0.0
    %1058 = vmatpush1.msra.mxu0 0.0
    %1059 = vmatprep.subr.mxu0 0.0
    %1060 = vmatpush1.msra.mxu0 0.0
    %1061 = vmatprep.subr.mxu0 0.0
    %1062 = vmatpush1.msra.mxu0 0.0
    %1063 = vmatprep.subr.mxu0 0.0
    %1064 = vmatpush1.msra.mxu0 0.0
    %1065 = vmatprep.subr.mxu0 0.0
    %1066 = vmatpush1.msra.mxu0 0.0
    %1067 = vmatprep.subr.mxu0 0.0
    %1068 = vmatpush1.msra.mxu0 0.0
    %1069 = vmatprep.subr.mxu0 0.0
    %1070 = vmatpush1.msra.mxu0 %v1031
    %1071 = vmatprep.subr.mxu0 0.0
    %1072 = vmatpush1.msra.mxu0 %v1030
    %1073 = vmatprep.subr.mxu0 0.0
    %1074 = vmatpush1.msra.mxu0 %v1029
    %1075 = vmatprep.subr.mxu0 0.0
    %1076 = vmatpush1.msra.mxu0 %v1028
    %1077 = vmatprep.subr.mxu0 0.0
    %1078 = vmatpush2.msra.mxu0 0.0
    %1079 = vmatprep.subr.mxu0 0.0
    %1080 = vmatpush2.msra.mxu0 0.0
    %1081 = vmatprep.subr.mxu0 0.0
    %1082 = vmatpush2.msra.mxu0 0.0
    %1083 = vmatprep.subr.mxu0 0.0
    %1084 = vmatpush2.msra.mxu0 0.0
    %1085 = vmatprep.subr.mxu0 0.0
    %1086 = vmatpush2.msra.mxu0 0.0
    %1087 = vmatprep.subr.mxu0 0.0
    %1088 = vmatpush2.msra.mxu0 0.0
    %1089 = vmatprep.subr.mxu0 0.0
    %1090 = vmatpush2.msra.mxu0 0.0
    %1091 = vmatprep.subr.mxu0 0.0
    %1092 = vmatpush2.msra.mxu0 0.0
    %1093 = vmatprep.subr.mxu0 0.0
    %1094 = vmatpush2.msra.mxu0 0.0
    %1095 = vmatprep.subr.mxu0 0.0
    %1096 = vmatpush2.msra.mxu0 0.0
    %1097 = vmatprep.subr.mxu0 0.0
    %1098 = vmatpush2.msra.mxu0 0.0
    %1099 = vmatprep.subr.mxu0 0.0
    %1100 = vmatpush2.msra.mxu0 0.0
    %1101 = vmatprep.subr.mxu0 0.0
    %1102 = vmatpush2.msra.mxu0 0.0
    %1103 = vmatprep.subr.mxu0 0.0
    %1104 = vmatpush2.msra.mxu0 0.0
    %1105 = vmatprep.subr.mxu0 0.0
    %1106 = vmatpush2.msra.mxu0 0.0
    %1107 = vmatprep.subr.mxu0 0.0
    %1108 = vmatpush2.msra.mxu0 0.0
    %1109 = vmatprep.mubr.f32.mxu0 0.0
    %1110 = vmatmul.mubr.f32.gmra.mxu0 %v1043
    %v1111 = vpop.f32.mrf.mxu0
    %v1112 = vadd.f32 %v1037, %v1111
    %v1113 = vpop.f32.mrf.mxu0
    %1114 = vdwg.mxu0
    %v1115 = vxor.u32 %v1112, 2147483648
    %v1116 = vmul.f32 %v1115, 1.442695
    %v1117 = vpow.pop %v1116
    %v1118 = vadd.f32 %v1117, 1.0
    %v1119 = vrcp.pop %v1118
    %v1120 = vmul.f32 1.0, %v1119
    %1121 = vst [vmem:[%s6] sm:$0xff] %v1120
    // Predicated region
    $region34: #{lstm_forward.1} parent=1 // pred_check
      _
    $region35: #{lstm_forward.1} parent=1 // pred_check_branch
      %1123 = sbr.rel (0) target = $region37
    $region36: #{lstm_forward.1} parent=1 // pred_region
      _
    $region37: #{lstm_forward.1} parent=1 // pred_fallthru
      _
    // Predicated region
    $region38: #{lstm_forward.1} parent=1 // pred_check
      _
    $region39: #{lstm_forward.1} parent=1 // pred_check_branch
      %1125 = sbr.rel (0) target = $region41
    $region40: #{lstm_forward.1} parent=1 // pred_region
      _
    $region41: #{lstm_forward.1} parent=1 // pred_fallthru
      _
    %1126 = vsyncpa [#allocation4], 1
    %1127 = vsyncpa [#allocation6], 1

</llo_original>
